<compile_context>
chip_gen: v6e
topology: v6e:2x2x1
jax: 0.10.0
libtpu: 0.0.40
codegen_flags: <defaults>
</compile_context>

<pallas_src>
import math
import functools

import jax
import jax.numpy as jnp
from jax.experimental import pallas as pl
from jax.experimental.pallas import tpu as pltpu


# ----------------------------------------------------------------------------
# In-kernel helpers
# ----------------------------------------------------------------------------
def _erf_f32(x):
    # float32 erf rational approximation (|x| clamped to 4): matches the exact
    # erf-based nn.GELU() to ~float32 precision without relying on an erf
    # primitive lowering inside Mosaic.  The divide is replaced by an EUP
    # reciprocal so it does not occupy VALU slots.
    alpha = (-2.72614225801306e-10, 2.77068142495902e-08, -2.10102402082508e-06,
             -5.69250639462346e-05, -7.34990630326855e-04, -2.95459980854025e-03,
             -1.60960333262415e-02)
    beta = (-1.45660718464996e-05, -2.13374055278905e-04, -1.68282697438203e-03,
            -7.37332916720468e-03, -1.42647390514189e-02)
    x = jnp.clip(x, -4.0, 4.0)
    x2 = x * x
    p = jnp.full_like(x2, alpha[0])
    for c in alpha[1:]:
        p = p * x2 + c
    q = jnp.full_like(x2, beta[0])
    for c in beta[1:]:
        q = q * x2 + c
    return x * p * pl.reciprocal(q, approx=True)


def _gelu_exact(x):
    return 0.5 * x * (1.0 + _erf_f32(x * (1.0 / math.sqrt(2.0))))


def _layernorm(x, g, b, eps=1e-6):
    mu = jnp.mean(x, axis=-1, keepdims=True)
    var = jnp.mean((x - mu) ** 2, axis=-1, keepdims=True)
    return (x - mu) * jax.lax.rsqrt(var + eps) * g + b


# ----------------------------------------------------------------------------
# Fused encoder kernel: grid = (batch, layer); activation persists in VMEM
# ----------------------------------------------------------------------------
def _encoder_kernel(p_ref, pw_ref, pos_ref, dvec_ref, bqkv_ref, b1_ref,
                    wqkv_ref, wo_ref, w1_ref, w2_ref, fn_ref,
                    *out_and_scratch, heads, head_dim, N, D, use_vis):
    if use_vis:
        xo_ref, attn_ref, x_sc, ctx_sc = out_and_scratch
    else:
        (xo_ref, x_sc, ctx_sc), attn_ref = out_and_scratch, None

    f32 = jnp.float32
    layer = pl.program_id(1)

    # ---- patch embedding (conv with kernel==stride == matmul) + pos embedding,
    #      first layer step only; result persists in the x scratch ----
    @pl.when(layer == 0)
    def _():
        x0 = jnp.dot(p_ref[0], pw_ref[...], preferred_element_type=f32)     # (N, D)
        x_sc[...] = x0 + pos_ref[...]                                       # pos + conv bias

    x = x_sc[...]

    vec = dvec_ref[0]                                     # (6, D) packed per-layer vectors
    ln1_g, ln1_b, bo = vec[0:1], vec[1:2], vec[2:3]
    ln2_g, ln2_b, b2 = vec[3:4], vec[4:5], vec[5:6]

    # ---- multi-head self-attention (pre-norm); single fused QKV matmul ----
    y = _layernorm(x, ln1_g, ln1_b)                                          # (N, D)
    qkv = jnp.dot(y, wqkv_ref[0], preferred_element_type=f32) + bqkv_ref[0]  # (N, 3D)
    # NOTE: the reference scale `qk / head_dim ** (-0.5)` (i.e. * sqrt(head_dim))
    # is pre-folded into the Q columns of wqkv/bqkv wrapper-side.

    for h in range(heads):                                # static unroll over heads
        lo = h * head_dim
        qh = qkv[:, lo:lo + head_dim]                     # (N, hd), pre-scaled
        kh = qkv[:, D + lo:D + lo + head_dim]
        vh = qkv[:, 2 * D + lo:2 * D + lo + head_dim]
        s = jax.lax.dot_general(qh, kh, (((1,), (1,)), ((), ())),
                                preferred_element_type=f32)                  # (N, N)
        s = s - jnp.max(s, axis=-1, keepdims=True)
        e = jnp.exp(s)
        p = e * pl.reciprocal(jnp.sum(e, axis=-1, keepdims=True), approx=True)
        if use_vis:
            attn_ref[0, h] = p.astype(attn_ref.dtype)     # visualization weights
        # Write this head's context into its static column range; the output
        # projection then becomes ONE (N, D) @ (D, D) matmul instead of
        # `heads` tiny K=head_dim matmuls.
        ctx_sc[:, lo:lo + head_dim] = jnp.dot(p, vh, preferred_element_type=f32)

    x = x + jnp.dot(ctx_sc[...], wo_ref[0], preferred_element_type=f32) + bo

    # ---- feed-forward (pre-norm) ----
    y2 = _layernorm(x, ln2_g, ln2_b)
    h1 = _gelu_exact(jnp.dot(y2, w1_ref[0], preferred_element_type=f32) + b1_ref[0])
    x = x + jnp.dot(h1, w2_ref[0], preferred_element_type=f32) + b2
    x_sc[...] = x

    # ---- final LayerNorm, last layer step only ----
    @pl.when(layer == pl.num_programs(1) - 1)
    def _():
        fn = fn_ref[...]
        xo_ref[0] = _layernorm(x, fn[0:1], fn[1:2]).astype(xo_ref.dtype)


# ----------------------------------------------------------------------------
# Wrapper (single pallas_call; grid over batch x depth)
# ----------------------------------------------------------------------------
def _extract_patches(feat, patch):
    """NCHW feature map -> (B, num_patches, C*ph*pw), conv-kernel ordering."""
    B, C, H, W = feat.shape
    ph, pw = patch
    Hp, Wp = H // ph, W // pw
    p = feat.reshape(B, C, Hp, ph, Wp, pw).transpose(0, 2, 4, 1, 3, 5)
    return p.reshape(B, Hp * Wp, C * ph * pw)


def encoder_forward(feat, params, patch, heads, use_vis=True):
    """Forward pass equivalent to Encoder.forward (post-backbone)."""
    patches = _extract_patches(feat, patch)                 # (B, N, K)
    B, N, K = patches.shape
    D = params["patch_w"].shape[1]
    layers = params["layers"]
    depth = len(layers)
    M = layers[0]["w1"].shape[1]
    head_dim = D // heads
    scale = float(head_dim) ** 0.5   # reproduces reference `qk / head_dim ** (-0.5)`

    # --- wrapper-side parameter packing (pure layout plumbing) ---
    pos_b = params["pos"] + params["patch_b"]               # (N, D)
    dvec = jnp.stack([jnp.concatenate(
        [lp["ln1_g"], lp["ln1_b"], lp["bo"],
         lp["ln2_g"], lp["ln2_b"], lp["b2"]], axis=0) for lp in layers])      # (depth, 6, D)
    wqkv = jnp.stack([jnp.concatenate(
        [lp["wq"] * scale, lp["wk"], lp["wv"]], axis=1) for lp in layers])    # (depth, D, 3D)
    bqkv = jnp.stack([jnp.concatenate(
        [lp["bq"] * scale, lp["bk"], lp["bv"]], axis=1) for lp in layers])    # (depth, 1, 3D)
    b1 = jnp.stack([lp["b1"] for lp in layers])             # (depth, 1, M)
    wo = jnp.stack([lp["wo"] for lp in layers])             # (depth, D, D)
    w1 = jnp.stack([lp["w1"] for lp in layers])             # (depth, D, M)
    w2 = jnp.stack([lp["w2"] for lp in layers])             # (depth, M, D)
    fn = jnp.concatenate([params["norm_g"], params["norm_b"]], axis=0)        # (2, D)

    kern = functools.partial(_encoder_kernel, heads=heads, head_dim=head_dim,
                             N=N, D=D, use_vis=use_vis)

    in_specs = [
        pl.BlockSpec((1, N, K), lambda b, l: (b, 0, 0)),        # patches (per batch)
        pl.BlockSpec((K, D), lambda b, l: (0, 0)),              # patch-embed weight
        pl.BlockSpec((N, D), lambda b, l: (0, 0)),              # pos emb + conv bias
        pl.BlockSpec((1, 6, D), lambda b, l: (l, 0, 0)),        # per-layer LN gains/biases
        pl.BlockSpec((1, 1, 3 * D), lambda b, l: (l, 0, 0)),    # fused QKV bias
        pl.BlockSpec((1, 1, M), lambda b, l: (l, 0, 0)),        # fc1 bias
        pl.BlockSpec((1, D, 3 * D), lambda b, l: (l, 0, 0)),    # fused QKV weight
        pl.BlockSpec((1, D, D), lambda b, l: (l, 0, 0)),        # out-proj weight
        pl.BlockSpec((1, D, M), lambda b, l: (l, 0, 0)),        # fc1 weight
        pl.BlockSpec((1, M, D), lambda b, l: (l, 0, 0)),        # fc2 weight
        pl.BlockSpec((2, D), lambda b, l: (0, 0)),              # final LayerNorm
    ]
    out_shape = [jax.ShapeDtypeStruct((B, N, D), jnp.float32)]
    out_specs = [pl.BlockSpec((1, N, D), lambda b, l: (b, 0, 0))]
    if use_vis:
        out_shape.append(jax.ShapeDtypeStruct((depth, B * heads, N, N), jnp.float32))
        out_specs.append(pl.BlockSpec((1, heads, N, N), lambda b, l: (l, b, 0, 0)))

    outs = pl.pallas_call(
        kern,
        out_shape=tuple(out_shape),
        grid=(B, depth),
        in_specs=in_specs,
        out_specs=tuple(out_specs),
        scratch_shapes=[pltpu.VMEM((N, D), jnp.float32),     # running activation
                        pltpu.VMEM((N, D), jnp.float32)],    # per-layer attention context
        compiler_params=pltpu.CompilerParams(
            dimension_semantics=("parallel", "arbitrary"),
            vmem_limit_bytes=32 * 1024 * 1024),
    )(patches, params["patch_w"], pos_b, dvec, bqkv, b1, wqkv, wo, w1, w2, fn)

    if use_vis:
        x, attn = outs
        attn = attn.reshape(depth, B, heads, N, N)
        attn_weights = [attn[l] for l in range(depth)]
    else:
        x = outs[0]
        attn_weights = []
    features = []  # TODO(synk): ResNetV2 skip features not available (backbone not provided)
    return x, attn_weights, features


# ----------------------------------------------------------------------------
# Deterministic parameter initialization
# ----------------------------------------------------------------------------
def _xavier_uniform(key, fan_in, fan_out):
    lim = math.sqrt(6.0 / (fan_in + fan_out))
    return jax.random.uniform(key, (fan_in, fan_out), jnp.float32, -lim, lim)


def _linear_default(key, fan_in, fan_out):
    kw, kb = jax.random.split(key)
    bound = 1.0 / math.sqrt(fan_in)
    w = jax.random.uniform(kw, (fan_in, fan_out), jnp.float32, -bound, bound)
    b = jax.random.uniform(kb, (1, fan_out), jnp.float32, -bound, bound)
    return w, b


def init_encoder_params(key, *, dim, heads, mlp_dim, depth, in_ch, patch, n_patches):
    ks = jax.random.split(key, depth + 1)
    K = in_ch * patch[0] * patch[1]
    kw, kb = jax.random.split(ks[0])
    bound = 1.0 / math.sqrt(K)
    params = {
        "patch_w": jax.random.uniform(kw, (K, dim), jnp.float32, -bound, bound),
        "patch_b": jax.random.uniform(kb, (1, dim), jnp.float32, -bound, bound),
        "pos": jnp.zeros((n_patches, dim), jnp.float32),     # nn.Parameter(zeros)
        "norm_g": jnp.ones((1, dim), jnp.float32),
        "norm_b": jnp.zeros((1, dim), jnp.float32),
        "layers": [],
    }
    for l in range(depth):
        lk = jax.random.split(ks[l + 1], 8)
        wq, bq = _linear_default(lk[0], dim, dim)
        wk, bk = _linear_default(lk[1], dim, dim)
        wv, bv = _linear_default(lk[2], dim, dim)
        wo, bo = _linear_default(lk[3], dim, dim)
        w1 = _xavier_uniform(lk[4], dim, mlp_dim)
        b1 = 1e-6 * jax.random.normal(lk[5], (1, mlp_dim), jnp.float32)
        w2 = _xavier_uniform(lk[6], mlp_dim, dim)
        b2 = 1e-6 * jax.random.normal(lk[7], (1, dim), jnp.float32)
        params["layers"].append(dict(
            ln1_g=jnp.ones((1, dim), jnp.float32), ln1_b=jnp.zeros((1, dim), jnp.float32),
            wq=wq, bq=bq, wk=wk, bk=bk, wv=wv, bv=bv, wo=wo, bo=bo,
            ln2_g=jnp.ones((1, dim), jnp.float32), ln2_b=jnp.zeros((1, dim), jnp.float32),
            w1=w1, b1=b1, w2=w2, b2=b2))
    return params


# ----------------------------------------------------------------------------
# Pure-JAX reference (mirrors the PyTorch semantics) for a sanity check
# ----------------------------------------------------------------------------
def ref_forward(feat, params, patch, heads):
    def ln(x, g, b, eps=1e-6):
        mu = jnp.mean(x, axis=-1, keepdims=True)
        var = jnp.mean((x - mu) ** 2, axis=-1, keepdims=True)
        return (x - mu) * jax.lax.rsqrt(var + eps) * g + b

    x = _extract_patches(feat, patch) @ params["patch_w"] + params["patch_b"]
    x = x + params["pos"]
    B, N, D = x.shape
    hd = D // heads
    attn = []
    for lp in params["layers"]:
        y = ln(x, lp["ln1_g"], lp["ln1_b"])
        q = (y @ lp["wq"] + lp["bq"]).reshape(B, N, heads, hd).transpose(0, 2, 1, 3)
        k = (y @ lp["wk"] + lp["bk"]).reshape(B, N, heads, hd).transpose(0, 2, 1, 3)
        v = (y @ lp["wv"] + lp["bv"]).reshape(B, N, heads, hd).transpose(0, 2, 1, 3)
        s = jnp.einsum('bhid,bhjd->bhij', q, k) * (hd ** 0.5)   # matches / hd**-0.5
        p = jax.nn.softmax(s, axis=-1)
        attn.append(p)
        ctx = jnp.einsum('bhij,bhjd->bhid', p, v).transpose(0, 2, 1, 3).reshape(B, N, D)
        x = x + ctx @ lp["wo"] + lp["bo"]
        y2 = ln(x, lp["ln2_g"], lp["ln2_b"])
        h1 = jax.nn.gelu(y2 @ lp["w1"] + lp["b1"], approximate=False)
        x = x + h1 @ lp["w2"] + lp["b2"]
    return ln(x, params["norm_g"], params["norm_b"]), attn


# ----------------------------------------------------------------------------
if __name__ == "__main__":
    key = jax.random.PRNGKey(0)
    # Config corresponds to img_dim=128, grid_dim=4 -> backbone feature map is
    # (img_dim//16)=8 spatial, patch_size=(2,2), patch_num=grid_dim**2=16.
    dim, heads, mlp_dim, depth = 32, 4, 64, 2
    B, in_ch, fh, fw = 2, 8, 8, 8
    patch = (2, 2)
    n_patches = (fh // patch[0]) * (fw // patch[1])

    kp, kx = jax.random.split(key)
    params = init_encoder_params(kp, dim=dim, heads=heads, mlp_dim=mlp_dim,
                                 depth=depth, in_ch=in_ch, patch=patch,
                                 n_patches=n_patches)
    feat = jax.random.normal(kx, (B, in_ch, fh, fw), jnp.float32)

    x, attn_weights, features = encoder_forward(feat, params, patch, heads, use_vis=True)
    jax.block_until_ready(x)
    for w in attn_weights:
        jax.block_until_ready(w)

    assert x.shape == (B, n_patches, dim)
    assert len(attn_weights) == depth
    assert attn_weights[0].shape == (B, heads, n_patches, n_patches)

    x_ref, attn_ref_list = ref_forward(feat, params, patch, heads)
    err = float(jnp.max(jnp.abs(x - x_ref)))
    if err > 5e-2:
        raise AssertionError(f"kernel/reference mismatch: max abs err = {err}")
    for l in range(depth):
        werr = float(jnp.max(jnp.abs(attn_weights[l] - attn_ref_list[l])))
        if werr > 5e-3:
            raise AssertionError(f"attn weights mismatch (layer {l}): {werr}")

    print("KERNEL_OK")
</pallas_src>

<mosaic_0001>
module attributes {stable_mosaic.version = 11 : i64} {
  func.func @_encoder_kernel(%arg0: i32, %arg1: i32, %arg2: memref<1x16x32xf32, #tpu.memory_space<vmem>>, %arg3: memref<32x32xf32, #tpu.memory_space<vmem>>, %arg4: memref<16x32xf32, #tpu.memory_space<vmem>>, %arg5: memref<1x6x32xf32, #tpu.memory_space<vmem>>, %arg6: memref<1x1x96xf32, #tpu.memory_space<vmem>>, %arg7: memref<1x1x64xf32, #tpu.memory_space<vmem>>, %arg8: memref<1x32x96xf32, #tpu.memory_space<vmem>>, %arg9: memref<1x32x32xf32, #tpu.memory_space<vmem>>, %arg10: memref<1x32x64xf32, #tpu.memory_space<vmem>>, %arg11: memref<1x64x32xf32, #tpu.memory_space<vmem>>, %arg12: memref<2x32xf32, #tpu.memory_space<vmem>>, %arg13: memref<1x16x32xf32, #tpu.memory_space<vmem>>, %arg14: memref<1x4x16x16xf32, #tpu.memory_space<vmem>>, %arg15: memref<16x32xf32, #tpu.memory_space<vmem>>, %arg16: memref<16x32xf32, #tpu.memory_space<vmem>>) attributes {dimension_semantics = [#tpu.dimension_semantics<parallel>, #tpu.dimension_semantics<arbitrary>], iteration_bounds = array<i64: 2, 2>, scalar_prefetch = 0 : i64, scratch_operands = 2 : i64, tpu.core_type = #tpu.core_type<tc>, window_params = [{transform_indices = @transform_0, window_bounds = array<i64: 1, 16, 32>}, {pipeline_mode = #tpu.pipeline_mode<synchronous>, transform_indices = @transform_1, window_bounds = array<i64: 32, 32>}, {pipeline_mode = #tpu.pipeline_mode<synchronous>, transform_indices = @transform_2, window_bounds = array<i64: 16, 32>}, {transform_indices = @transform_3, window_bounds = array<i64: 1, 6, 32>}, {transform_indices = @transform_4, window_bounds = array<i64: 1, 1, 96>}, {transform_indices = @transform_5, window_bounds = array<i64: 1, 1, 64>}, {transform_indices = @transform_6, window_bounds = array<i64: 1, 32, 96>}, {transform_indices = @transform_7, window_bounds = array<i64: 1, 32, 32>}, {transform_indices = @transform_8, window_bounds = array<i64: 1, 32, 64>}, {transform_indices = @transform_9, window_bounds = array<i64: 1, 64, 32>}, {pipeline_mode = #tpu.pipeline_mode<synchronous>, transform_indices = @transform_10, window_bounds = array<i64: 2, 32>}, {transform_indices = @transform_11, window_bounds = array<i64: 1, 16, 32>}, {transform_indices = @transform_12, window_bounds = array<i64: 1, 4, 16, 16>}]} {
    %c0_i32 = arith.constant 0 : i32
    %0 = arith.cmpi eq, %arg1, %c0_i32 : i32
    %1 = arith.extui %0 : i1 to i32
    %c0_i32_0 = arith.constant 0 : i32
    %2 = arith.cmpi ne, %1, %c0_i32_0 : i32
    scf.if %2 {
      %c0_92 = arith.constant 0 : index
      %c0_93 = arith.constant 0 : index
      %c0_94 = arith.constant 0 : index
      %210 = vector.load %arg2[%c0_92, %c0_93, %c0_94] : memref<1x16x32xf32, #tpu.memory_space<vmem>>, vector<1x16x32xf32>
      %211 = vector.shape_cast %210 : vector<1x16x32xf32> to vector<16x32xf32>
      %c0_95 = arith.constant 0 : index
      %c0_96 = arith.constant 0 : index
      %212 = vector.load %arg3[%c0_95, %c0_96] : memref<32x32xf32, #tpu.memory_space<vmem>>, vector<32x32xf32>
      %cst_97 = arith.constant dense<0.000000e+00> : vector<16x32xf32>
      %213 = tpu.matmul %211, %212, %cst_97 {dimension_numbers = #tpu.dot_dimension_numbers<[1], [0], [0], [1], [0, 0, 1, 1], [], []>} : vector<16x32xf32>, vector<32x32xf32>, vector<16x32xf32> -> vector<16x32xf32>
      %c0_98 = arith.constant 0 : index
      %c0_99 = arith.constant 0 : index
      %214 = vector.load %arg4[%c0_98, %c0_99] : memref<16x32xf32, #tpu.memory_space<vmem>>, vector<16x32xf32>
      %215 = arith.addf %213, %214 : vector<16x32xf32>
      %c0_100 = arith.constant 0 : index
      %c0_101 = arith.constant 0 : index
      %216 = vector.load %arg15[%c0_100, %c0_101] : memref<16x32xf32, #tpu.memory_space<vmem>>, vector<16x32xf32>
      tpu.vector_store %arg15[%c0_100, %c0_101], %215 {strides = array<i32>} : memref<16x32xf32, #tpu.memory_space<vmem>>, vector<16x32xf32>,
    } else {
    }
    %c0 = arith.constant 0 : index
    %c0_1 = arith.constant 0 : index
    %3 = vector.load %arg15[%c0, %c0_1] : memref<16x32xf32, #tpu.memory_space<vmem>>, vector<16x32xf32>
    %c0_2 = arith.constant 0 : index
    %c0_3 = arith.constant 0 : index
    %c0_4 = arith.constant 0 : index
    %4 = vector.load %arg5[%c0_2, %c0_3, %c0_4] : memref<1x6x32xf32, #tpu.memory_space<vmem>>, vector<1x6x32xf32>
    %5 = vector.shape_cast %4 : vector<1x6x32xf32> to vector<6x32xf32>
    %6 = vector.extract_strided_slice %5 {offsets = [0, 0], sizes = [1, 32], strides = [1, 1]} : vector<6x32xf32> to vector<1x32xf32>
    %7 = vector.extract_strided_slice %5 {offsets = [1, 0], sizes = [1, 32], strides = [1, 1]} : vector<6x32xf32> to vector<1x32xf32>
    %8 = vector.extract_strided_slice %5 {offsets = [2, 0], sizes = [1, 32], strides = [1, 1]} : vector<6x32xf32> to vector<1x32xf32>
    %9 = vector.extract_strided_slice %5 {offsets = [3, 0], sizes = [1, 32], strides = [1, 1]} : vector<6x32xf32> to vector<1x32xf32>
    %10 = vector.extract_strided_slice %5 {offsets = [4, 0], sizes = [1, 32], strides = [1, 1]} : vector<6x32xf32> to vector<1x32xf32>
    %11 = vector.extract_strided_slice %5 {offsets = [5, 0], sizes = [1, 32], strides = [1, 1]} : vector<6x32xf32> to vector<1x32xf32>
    %cst = arith.constant dense<0.000000e+00> : vector<16xf32>
    %12 = vector.multi_reduction <add>, %3, %cst [1] : vector<16x32xf32> to vector<16xf32>
    %13 = vector.shape_cast %12 : vector<16xf32> to vector<16x1xf32>
    %cst_5 = arith.constant 3.200000e+01 : f32
    %14 = vector.broadcast %cst_5 : f32 to vector<16x1xf32>
    %15 = arith.divf %13, %14 : vector<16x1xf32>
    %16 = vector.broadcast %15 : vector<16x1xf32> to vector<16x32xf32>
    %17 = arith.subf %3, %16 : vector<16x32xf32>
    %18 = arith.mulf %17, %17 : vector<16x32xf32>
    %cst_6 = arith.constant dense<0.000000e+00> : vector<16xf32>
    %19 = vector.multi_reduction <add>, %18, %cst_6 [1] : vector<16x32xf32> to vector<16xf32>
    %20 = vector.shape_cast %19 : vector<16xf32> to vector<16x1xf32>
    %cst_7 = arith.constant 3.200000e+01 : f32
    %21 = vector.broadcast %cst_7 : f32 to vector<16x1xf32>
    %22 = arith.divf %20, %21 : vector<16x1xf32>
    %23 = vector.broadcast %15 : vector<16x1xf32> to vector<16x32xf32>
    %24 = arith.subf %3, %23 : vector<16x32xf32>
    %cst_8 = arith.constant 9.99999997E-7 : f32
    %25 = vector.broadcast %cst_8 : f32 to vector<16x1xf32>
    %26 = arith.addf %22, %25 : vector<16x1xf32>
    %27 = math.rsqrt %26 : vector<16x1xf32>
    %28 = vector.broadcast %27 : vector<16x1xf32> to vector<16x32xf32>
    %29 = arith.mulf %24, %28 : vector<16x32xf32>
    %30 = vector.broadcast %6 : vector<1x32xf32> to vector<16x32xf32>
    %31 = arith.mulf %29, %30 : vector<16x32xf32>
    %32 = vector.broadcast %7 : vector<1x32xf32> to vector<16x32xf32>
    %33 = arith.addf %31, %32 : vector<16x32xf32>
    %c0_9 = arith.constant 0 : index
    %c0_10 = arith.constant 0 : index
    %c0_11 = arith.constant 0 : index
    %34 = vector.load %arg8[%c0_9, %c0_10, %c0_11] : memref<1x32x96xf32, #tpu.memory_space<vmem>>, vector<1x32x96xf32>
    %35 = vector.shape_cast %34 : vector<1x32x96xf32> to vector<32x96xf32>
    %cst_12 = arith.constant dense<0.000000e+00> : vector<16x96xf32>
    %36 = tpu.matmul %33, %35, %cst_12 {dimension_numbers = #tpu.dot_dimension_numbers<[1], [0], [0], [1], [0, 0, 1, 1], [], []>} : vector<16x32xf32>, vector<32x96xf32>, vector<16x96xf32> -> vector<16x96xf32>
    %c0_13 = arith.constant 0 : index
    %c0_14 = arith.constant 0 : index
    %c0_15 = arith.constant 0 : index
    %37 = vector.load %arg6[%c0_13, %c0_14, %c0_15] : memref<1x1x96xf32, #tpu.memory_space<vmem>>, vector<1x1x96xf32>
    %38 = vector.shape_cast %37 : vector<1x1x96xf32> to vector<1x96xf32>
    %39 = vector.broadcast %38 : vector<1x96xf32> to vector<16x96xf32>
    %40 = arith.addf %36, %39 : vector<16x96xf32>
    %41 = vector.extract_strided_slice %40 {offsets = [0, 0], sizes = [16, 8], strides = [1, 1]} : vector<16x96xf32> to vector<16x8xf32>
    %42 = vector.extract_strided_slice %40 {offsets = [0, 32], sizes = [16, 8], strides = [1, 1]} : vector<16x96xf32> to vector<16x8xf32>
    %43 = vector.extract_strided_slice %40 {offsets = [0, 64], sizes = [16, 8], strides = [1, 1]} : vector<16x96xf32> to vector<16x8xf32>
    %cst_16 = arith.constant dense<0.000000e+00> : vector<16x16xf32>
    %44 = tpu.matmul %41, %42, %cst_16 {dimension_numbers = #tpu.dot_dimension_numbers<[1], [1], [0], [0], [0, 0, 1, 0], [], []>} : vector<16x8xf32>, vector<16x8xf32>, vector<16x16xf32> -> vector<16x16xf32>
    %cst_17 = arith.constant dense<0xFF800000> : vector<16xf32>
    %45 = vector.multi_reduction <maximumf>, %44, %cst_17 [1] : vector<16x16xf32> to vector<16xf32>
    %46 = vector.shape_cast %45 : vector<16xf32> to vector<16x1xf32>
    %47 = vector.broadcast %46 : vector<16x1xf32> to vector<16x16xf32>
    %48 = arith.subf %44, %47 : vector<16x16xf32>
    %49 = math.exp %48 : vector<16x16xf32>
    %cst_18 = arith.constant dense<0.000000e+00> : vector<16xf32>
    %50 = vector.multi_reduction <add>, %49, %cst_18 [1] : vector<16x16xf32> to vector<16xf32>
    %51 = vector.shape_cast %50 : vector<16xf32> to vector<16x1xf32>
    %52 = tpu.reciprocal %51 {approx = true} : vector<16x1xf32> -> vector<16x1xf32>
    %53 = vector.broadcast %52 : vector<16x1xf32> to vector<16x16xf32>
    %54 = arith.mulf %49, %53 : vector<16x16xf32>
    %c0_19 = arith.constant 0 : index
    %c0_20 = arith.constant 0 : index
    %c0_21 = arith.constant 0 : index
    %c0_22 = arith.constant 0 : index
    %55 = vector.load %arg14[%c0_19, %c0_20, %c0_21, %c0_22] : memref<1x4x16x16xf32, #tpu.memory_space<vmem>>, vector<1x1x16x16xf32>
    %56 = vector.shape_cast %55 : vector<1x1x16x16xf32> to vector<16x16xf32>
    %57 = vector.shape_cast %54 : vector<16x16xf32> to vector<1x1x16x16xf32>
    tpu.vector_store %arg14[%c0_19, %c0_20, %c0_21, %c0_22], %57 {strides = array<i32>} : memref<1x4x16x16xf32, #tpu.memory_space<vmem>>, vector<1x1x16x16xf32>,
    %cst_23 = arith.constant dense<0.000000e+00> : vector<16x8xf32>
    %58 = tpu.matmul %54, %43, %cst_23 {dimension_numbers = #tpu.dot_dimension_numbers<[1], [0], [0], [1], [0, 0, 1, 1], [], []>} : vector<16x16xf32>, vector<16x8xf32>, vector<16x8xf32> -> vector<16x8xf32>
    %c0_24 = arith.constant 0 : index
    %c0_25 = arith.constant 0 : index
    %59 = vector.load %arg16[%c0_24, %c0_25] : memref<16x32xf32, #tpu.memory_space<vmem>>, vector<16x8xf32>
    tpu.vector_store %arg16[%c0_24, %c0_25], %58 {strides = array<i32>} : memref<16x32xf32, #tpu.memory_space<vmem>>, vector<16x8xf32>,
    %60 = vector.extract_strided_slice %40 {offsets = [0, 8], sizes = [16, 8], strides = [1, 1]} : vector<16x96xf32> to vector<16x8xf32>
    %61 = vector.extract_strided_slice %40 {offsets = [0, 40], sizes = [16, 8], strides = [1, 1]} : vector<16x96xf32> to vector<16x8xf32>
    %62 = vector.extract_strided_slice %40 {offsets = [0, 72], sizes = [16, 8], strides = [1, 1]} : vector<16x96xf32> to vector<16x8xf32>
    %cst_26 = arith.constant dense<0.000000e+00> : vector<16x16xf32>
    %63 = tpu.matmul %60, %61, %cst_26 {dimension_numbers = #tpu.dot_dimension_numbers<[1], [1], [0], [0], [0, 0, 1, 0], [], []>} : vector<16x8xf32>, vector<16x8xf32>, vector<16x16xf32> -> vector<16x16xf32>
    %cst_27 = arith.constant dense<0xFF800000> : vector<16xf32>
    %64 = vector.multi_reduction <maximumf>, %63, %cst_27 [1] : vector<16x16xf32> to vector<16xf32>
    %65 = vector.shape_cast %64 : vector<16xf32> to vector<16x1xf32>
    %66 = vector.broadcast %65 : vector<16x1xf32> to vector<16x16xf32>
    %67 = arith.subf %63, %66 : vector<16x16xf32>
    %68 = math.exp %67 : vector<16x16xf32>
    %cst_28 = arith.constant dense<0.000000e+00> : vector<16xf32>
    %69 = vector.multi_reduction <add>, %68, %cst_28 [1] : vector<16x16xf32> to vector<16xf32>
    %70 = vector.shape_cast %69 : vector<16xf32> to vector<16x1xf32>
    %71 = tpu.reciprocal %70 {approx = true} : vector<16x1xf32> -> vector<16x1xf32>
    %72 = vector.broadcast %71 : vector<16x1xf32> to vector<16x16xf32>
    %73 = arith.mulf %68, %72 : vector<16x16xf32>
    %c0_29 = arith.constant 0 : index
    %c1 = arith.constant 1 : index
    %c0_30 = arith.constant 0 : index
    %c0_31 = arith.constant 0 : index
    %74 = vector.load %arg14[%c0_29, %c1, %c0_30, %c0_31] : memref<1x4x16x16xf32, #tpu.memory_space<vmem>>, vector<1x1x16x16xf32>
    %75 = vector.shape_cast %74 : vector<1x1x16x16xf32> to vector<16x16xf32>
    %76 = vector.shape_cast %73 : vector<16x16xf32> to vector<1x1x16x16xf32>
    tpu.vector_store %arg14[%c0_29, %c1, %c0_30, %c0_31], %76 {strides = array<i32>} : memref<1x4x16x16xf32, #tpu.memory_space<vmem>>, vector<1x1x16x16xf32>,
    %cst_32 = arith.constant dense<0.000000e+00> : vector<16x8xf32>
    %77 = tpu.matmul %73, %62, %cst_32 {dimension_numbers = #tpu.dot_dimension_numbers<[1], [0], [0], [1], [0, 0, 1, 1], [], []>} : vector<16x16xf32>, vector<16x8xf32>, vector<16x8xf32> -> vector<16x8xf32>
    %c0_33 = arith.constant 0 : index
    %c8 = arith.constant 8 : index
    %78 = vector.load %arg16[%c0_33, %c8] : memref<16x32xf32, #tpu.memory_space<vmem>>, vector<16x8xf32>
    tpu.vector_store %arg16[%c0_33, %c8], %77 {strides = array<i32>} : memref<16x32xf32, #tpu.memory_space<vmem>>, vector<16x8xf32>,
    %79 = vector.extract_strided_slice %40 {offsets = [0, 16], sizes = [16, 8], strides = [1, 1]} : vector<16x96xf32> to vector<16x8xf32>
    %80 = vector.extract_strided_slice %40 {offsets = [0, 48], sizes = [16, 8], strides = [1, 1]} : vector<16x96xf32> to vector<16x8xf32>
    %81 = vector.extract_strided_slice %40 {offsets = [0, 80], sizes = [16, 8], strides = [1, 1]} : vector<16x96xf32> to vector<16x8xf32>
    %cst_34 = arith.constant dense<0.000000e+00> : vector<16x16xf32>
    %82 = tpu.matmul %79, %80, %cst_34 {dimension_numbers = #tpu.dot_dimension_numbers<[1], [1], [0], [0], [0, 0, 1, 0], [], []>} : vector<16x8xf32>, vector<16x8xf32>, vector<16x16xf32> -> vector<16x16xf32>
    %cst_35 = arith.constant dense<0xFF800000> : vector<16xf32>
    %83 = vector.multi_reduction <maximumf>, %82, %cst_35 [1] : vector<16x16xf32> to vector<16xf32>
    %84 = vector.shape_cast %83 : vector<16xf32> to vector<16x1xf32>
    %85 = vector.broadcast %84 : vector<16x1xf32> to vector<16x16xf32>
    %86 = arith.subf %82, %85 : vector<16x16xf32>
    %87 = math.exp %86 : vector<16x16xf32>
    %cst_36 = arith.constant dense<0.000000e+00> : vector<16xf32>
    %88 = vector.multi_reduction <add>, %87, %cst_36 [1] : vector<16x16xf32> to vector<16xf32>
    %89 = vector.shape_cast %88 : vector<16xf32> to vector<16x1xf32>
    %90 = tpu.reciprocal %89 {approx = true} : vector<16x1xf32> -> vector<16x1xf32>
    %91 = vector.broadcast %90 : vector<16x1xf32> to vector<16x16xf32>
    %92 = arith.mulf %87, %91 : vector<16x16xf32>
    %c0_37 = arith.constant 0 : index
    %c2 = arith.constant 2 : index
    %c0_38 = arith.constant 0 : index
    %c0_39 = arith.constant 0 : index
    %93 = vector.load %arg14[%c0_37, %c2, %c0_38, %c0_39] : memref<1x4x16x16xf32, #tpu.memory_space<vmem>>, vector<1x1x16x16xf32>
    %94 = vector.shape_cast %93 : vector<1x1x16x16xf32> to vector<16x16xf32>
    %95 = vector.shape_cast %92 : vector<16x16xf32> to vector<1x1x16x16xf32>
    tpu.vector_store %arg14[%c0_37, %c2, %c0_38, %c0_39], %95 {strides = array<i32>} : memref<1x4x16x16xf32, #tpu.memory_space<vmem>>, vector<1x1x16x16xf32>,
    %cst_40 = arith.constant dense<0.000000e+00> : vector<16x8xf32>
    %96 = tpu.matmul %92, %81, %cst_40 {dimension_numbers = #tpu.dot_dimension_numbers<[1], [0], [0], [1], [0, 0, 1, 1], [], []>} : vector<16x16xf32>, vector<16x8xf32>, vector<16x8xf32> -> vector<16x8xf32>
    %c0_41 = arith.constant 0 : index
    %c16 = arith.constant 16 : index
    %97 = vector.load %arg16[%c0_41, %c16] : memref<16x32xf32, #tpu.memory_space<vmem>>, vector<16x8xf32>
    tpu.vector_store %arg16[%c0_41, %c16], %96 {strides = array<i32>} : memref<16x32xf32, #tpu.memory_space<vmem>>, vector<16x8xf32>,
    %98 = vector.extract_strided_slice %40 {offsets = [0, 24], sizes = [16, 8], strides = [1, 1]} : vector<16x96xf32> to vector<16x8xf32>
    %99 = vector.extract_strided_slice %40 {offsets = [0, 56], sizes = [16, 8], strides = [1, 1]} : vector<16x96xf32> to vector<16x8xf32>
    %100 = vector.extract_strided_slice %40 {offsets = [0, 88], sizes = [16, 8], strides = [1, 1]} : vector<16x96xf32> to vector<16x8xf32>
    %cst_42 = arith.constant dense<0.000000e+00> : vector<16x16xf32>
    %101 = tpu.matmul %98, %99, %cst_42 {dimension_numbers = #tpu.dot_dimension_numbers<[1], [1], [0], [0], [0, 0, 1, 0], [], []>} : vector<16x8xf32>, vector<16x8xf32>, vector<16x16xf32> -> vector<16x16xf32>
    %cst_43 = arith.constant dense<0xFF800000> : vector<16xf32>
    %102 = vector.multi_reduction <maximumf>, %101, %cst_43 [1] : vector<16x16xf32> to vector<16xf32>
    %103 = vector.shape_cast %102 : vector<16xf32> to vector<16x1xf32>
    %104 = vector.broadcast %103 : vector<16x1xf32> to vector<16x16xf32>
    %105 = arith.subf %101, %104 : vector<16x16xf32>
    %106 = math.exp %105 : vector<16x16xf32>
    %cst_44 = arith.constant dense<0.000000e+00> : vector<16xf32>
    %107 = vector.multi_reduction <add>, %106, %cst_44 [1] : vector<16x16xf32> to vector<16xf32>
    %108 = vector.shape_cast %107 : vector<16xf32> to vector<16x1xf32>
    %109 = tpu.reciprocal %108 {approx = true} : vector<16x1xf32> -> vector<16x1xf32>
    %110 = vector.broadcast %109 : vector<16x1xf32> to vector<16x16xf32>
    %111 = arith.mulf %106, %110 : vector<16x16xf32>
    %c0_45 = arith.constant 0 : index
    %c3 = arith.constant 3 : index
    %c0_46 = arith.constant 0 : index
    %c0_47 = arith.constant 0 : index
    %112 = vector.load %arg14[%c0_45, %c3, %c0_46, %c0_47] : memref<1x4x16x16xf32, #tpu.memory_space<vmem>>, vector<1x1x16x16xf32>
    %113 = vector.shape_cast %112 : vector<1x1x16x16xf32> to vector<16x16xf32>
    %114 = vector.shape_cast %111 : vector<16x16xf32> to vector<1x1x16x16xf32>
    tpu.vector_store %arg14[%c0_45, %c3, %c0_46, %c0_47], %114 {strides = array<i32>} : memref<1x4x16x16xf32, #tpu.memory_space<vmem>>, vector<1x1x16x16xf32>,
    %cst_48 = arith.constant dense<0.000000e+00> : vector<16x8xf32>
    %115 = tpu.matmul %111, %100, %cst_48 {dimension_numbers = #tpu.dot_dimension_numbers<[1], [0], [0], [1], [0, 0, 1, 1], [], []>} : vector<16x16xf32>, vector<16x8xf32>, vector<16x8xf32> -> vector<16x8xf32>
    %c0_49 = arith.constant 0 : index
    %c24 = arith.constant 24 : index
    %116 = vector.load %arg16[%c0_49, %c24] : memref<16x32xf32, #tpu.memory_space<vmem>>, vector<16x8xf32>
    tpu.vector_store %arg16[%c0_49, %c24], %115 {strides = array<i32>} : memref<16x32xf32, #tpu.memory_space<vmem>>, vector<16x8xf32>,
    %c0_50 = arith.constant 0 : index
    %c0_51 = arith.constant 0 : index
    %117 = vector.load %arg16[%c0_50, %c0_51] : memref<16x32xf32, #tpu.memory_space<vmem>>, vector<16x32xf32>
    %c0_52 = arith.constant 0 : index
    %c0_53 = arith.constant 0 : index
    %c0_54 = arith.constant 0 : index
    %118 = vector.load %arg9[%c0_52, %c0_53, %c0_54] : memref<1x32x32xf32, #tpu.memory_space<vmem>>, vector<1x32x32xf32>
    %119 = vector.shape_cast %118 : vector<1x32x32xf32> to vector<32x32xf32>
    %cst_55 = arith.constant dense<0.000000e+00> : vector<16x32xf32>
    %120 = tpu.matmul %117, %119, %cst_55 {dimension_numbers = #tpu.dot_dimension_numbers<[1], [0], [0], [1], [0, 0, 1, 1], [], []>} : vector<16x32xf32>, vector<32x32xf32>, vector<16x32xf32> -> vector<16x32xf32>
    %121 = arith.addf %3, %120 : vector<16x32xf32>
    %122 = vector.broadcast %8 : vector<1x32xf32> to vector<16x32xf32>
    %123 = arith.addf %121, %122 : vector<16x32xf32>
    %cst_56 = arith.constant dense<0.000000e+00> : vector<16xf32>
    %124 = vector.multi_reduction <add>, %123, %cst_56 [1] : vector<16x32xf32> to vector<16xf32>
    %125 = vector.shape_cast %124 : vector<16xf32> to vector<16x1xf32>
    %cst_57 = arith.constant 3.200000e+01 : f32
    %126 = vector.broadcast %cst_57 : f32 to vector<16x1xf32>
    %127 = arith.divf %125, %126 : vector<16x1xf32>
    %128 = vector.broadcast %127 : vector<16x1xf32> to vector<16x32xf32>
    %129 = arith.subf %123, %128 : vector<16x32xf32>
    %130 = arith.mulf %129, %129 : vector<16x32xf32>
    %cst_58 = arith.constant dense<0.000000e+00> : vector<16xf32>
    %131 = vector.multi_reduction <add>, %130, %cst_58 [1] : vector<16x32xf32> to vector<16xf32>
    %132 = vector.shape_cast %131 : vector<16xf32> to vector<16x1xf32>
    %cst_59 = arith.constant 3.200000e+01 : f32
    %133 = vector.broadcast %cst_59 : f32 to vector<16x1xf32>
    %134 = arith.divf %132, %133 : vector<16x1xf32>
    %135 = vector.broadcast %127 : vector<16x1xf32> to vector<16x32xf32>
    %136 = arith.subf %123, %135 : vector<16x32xf32>
    %cst_60 = arith.constant 9.99999997E-7 : f32
    %137 = vector.broadcast %cst_60 : f32 to vector<16x1xf32>
    %138 = arith.addf %134, %137 : vector<16x1xf32>
    %139 = math.rsqrt %138 : vector<16x1xf32>
    %140 = vector.broadcast %139 : vector<16x1xf32> to vector<16x32xf32>
    %141 = arith.mulf %136, %140 : vector<16x32xf32>
    %142 = vector.broadcast %9 : vector<1x32xf32> to vector<16x32xf32>
    %143 = arith.mulf %141, %142 : vector<16x32xf32>
    %144 = vector.broadcast %10 : vector<1x32xf32> to vector<16x32xf32>
    %145 = arith.addf %143, %144 : vector<16x32xf32>
    %c0_61 = arith.constant 0 : index
    %c0_62 = arith.constant 0 : index
    %c0_63 = arith.constant 0 : index
    %146 = vector.load %arg10[%c0_61, %c0_62, %c0_63] : memref<1x32x64xf32, #tpu.memory_space<vmem>>, vector<1x32x64xf32>
    %147 = vector.shape_cast %146 : vector<1x32x64xf32> to vector<32x64xf32>
    %cst_64 = arith.constant dense<0.000000e+00> : vector<16x64xf32>
    %148 = tpu.matmul %145, %147, %cst_64 {dimension_numbers = #tpu.dot_dimension_numbers<[1], [0], [0], [1], [0, 0, 1, 1], [], []>} : vector<16x32xf32>, vector<32x64xf32>, vector<16x64xf32> -> vector<16x64xf32>
    %c0_65 = arith.constant 0 : index
    %c0_66 = arith.constant 0 : index
    %c0_67 = arith.constant 0 : index
    %149 = vector.load %arg7[%c0_65, %c0_66, %c0_67] : memref<1x1x64xf32, #tpu.memory_space<vmem>>, vector<1x1x64xf32>
    %150 = vector.shape_cast %149 : vector<1x1x64xf32> to vector<1x64xf32>
    %151 = vector.broadcast %150 : vector<1x64xf32> to vector<16x64xf32>
    %152 = arith.addf %148, %151 : vector<16x64xf32>
    %cst_68 = arith.constant 5.000000e-01 : f32
    %153 = vector.broadcast %cst_68 : f32 to vector<16x64xf32>
    %154 = arith.mulf %153, %152 : vector<16x64xf32>
    %cst_69 = arith.constant 0.707106769 : f32
    %155 = vector.broadcast %cst_69 : f32 to vector<16x64xf32>
    %156 = arith.mulf %152, %155 : vector<16x64xf32>
    %cst_70 = arith.constant -4.000000e+00 : f32
    %cst_71 = arith.constant 4.000000e+00 : f32
    %157 = vector.broadcast %cst_70 : f32 to vector<16x64xf32>
    %158 = arith.maximumf %157, %156 : vector<16x64xf32>
    %159 = vector.broadcast %cst_71 : f32 to vector<16x64xf32>
    %160 = arith.minimumf %159, %158 : vector<16x64xf32>
    %161 = arith.mulf %160, %160 : vector<16x64xf32>
    %cst_72 = arith.constant -2.72614237E-10 : f32
    %162 = vector.broadcast %cst_72 : f32 to vector<16x64xf32>
    %163 = arith.mulf %162, %161 : vector<16x64xf32>
    %cst_73 = arith.constant 2.77068146E-8 : f32
    %164 = vector.broadcast %cst_73 : f32 to vector<16x64xf32>
    %165 = arith.addf %163, %164 : vector<16x64xf32>
    %166 = arith.mulf %165, %161 : vector<16x64xf32>
    %cst_74 = arith.constant -2.10102394E-6 : f32
    %167 = vector.broadcast %cst_74 : f32 to vector<16x64xf32>
    %168 = arith.addf %166, %167 : vector<16x64xf32>
    %169 = arith.mulf %168, %161 : vector<16x64xf32>
    %cst_75 = arith.constant -5.69250624E-5 : f32
    %170 = vector.broadcast %cst_75 : f32 to vector<16x64xf32>
    %171 = arith.addf %169, %170 : vector<16x64xf32>
    %172 = arith.mulf %171, %161 : vector<16x64xf32>
    %cst_76 = arith.constant -7.34990637E-4 : f32
    %173 = vector.broadcast %cst_76 : f32 to vector<16x64xf32>
    %174 = arith.addf %172, %173 : vector<16x64xf32>
    %175 = arith.mulf %174, %161 : vector<16x64xf32>
    %cst_77 = arith.constant -2.954600e-03 : f32
    %176 = vector.broadcast %cst_77 : f32 to vector<16x64xf32>
    %177 = arith.addf %175, %176 : vector<16x64xf32>
    %178 = arith.mulf %177, %161 : vector<16x64xf32>
    %cst_78 = arith.constant -0.0160960332 : f32
    %179 = vector.broadcast %cst_78 : f32 to vector<16x64xf32>
    %180 = arith.addf %178, %179 : vector<16x64xf32>
    %cst_79 = arith.constant -1.45660715E-5 : f32
    %181 = vector.broadcast %cst_79 : f32 to vector<16x64xf32>
    %182 = arith.mulf %181, %161 : vector<16x64xf32>
    %cst_80 = arith.constant -2.13374049E-4 : f32
    %183 = vector.broadcast %cst_80 : f32 to vector<16x64xf32>
    %184 = arith.addf %182, %183 : vector<16x64xf32>
    %185 = arith.mulf %184, %161 : vector<16x64xf32>
    %cst_81 = arith.constant -0.00168282702 : f32
    %186 = vector.broadcast %cst_81 : f32 to vector<16x64xf32>
    %187 = arith.addf %185, %186 : vector<16x64xf32>
    %188 = arith.mulf %187, %161 : vector<16x64xf32>
    %cst_82 = arith.constant -0.00737332925 : f32
    %189 = vector.broadcast %cst_82 : f32 to vector<16x64xf32>
    %190 = arith.addf %188, %189 : vector<16x64xf32>
    %191 = arith.mulf %190, %161 : vector<16x64xf32>
    %cst_83 = arith.constant -0.0142647391 : f32
    %192 = vector.broadcast %cst_83 : f32 to vector<16x64xf32>
    %193 = arith.addf %191, %192 : vector<16x64xf32>
    %194 = arith.mulf %160, %180 : vector<16x64xf32>
    %195 = tpu.reciprocal %193 {approx = true} : vector<16x64xf32> -> vector<16x64xf32>
    %196 = arith.mulf %194, %195 : vector<16x64xf32>
    %cst_84 = arith.constant 1.000000e+00 : f32
    %197 = vector.broadcast %cst_84 : f32 to vector<16x64xf32>
    %198 = arith.addf %197, %196 : vector<16x64xf32>
    %199 = arith.mulf %154, %198 : vector<16x64xf32>
    %c0_85 = arith.constant 0 : index
    %c0_86 = arith.constant 0 : index
    %c0_87 = arith.constant 0 : index
    %200 = vector.load %arg11[%c0_85, %c0_86, %c0_87] : memref<1x64x32xf32, #tpu.memory_space<vmem>>, vector<1x64x32xf32>
    %201 = vector.shape_cast %200 : vector<1x64x32xf32> to vector<64x32xf32>
    %cst_88 = arith.constant dense<0.000000e+00> : vector<16x32xf32>
    %202 = tpu.matmul %199, %201, %cst_88 {dimension_numbers = #tpu.dot_dimension_numbers<[1], [0], [0], [1], [0, 0, 1, 1], [], []>} : vector<16x64xf32>, vector<64x32xf32>, vector<16x32xf32> -> vector<16x32xf32>
    %203 = arith.addf %123, %202 : vector<16x32xf32>
    %204 = vector.broadcast %11 : vector<1x32xf32> to vector<16x32xf32>
    %205 = arith.addf %203, %204 : vector<16x32xf32>
    %c0_89 = arith.constant 0 : index
    %c0_90 = arith.constant 0 : index
    %206 = vector.load %arg15[%c0_89, %c0_90] : memref<16x32xf32, #tpu.memory_space<vmem>>, vector<16x32xf32>
    tpu.vector_store %arg15[%c0_89, %c0_90], %205 {strides = array<i32>} : memref<16x32xf32, #tpu.memory_space<vmem>>, vector<16x32xf32>,
    %c1_i32 = arith.constant 1 : i32
    %207 = arith.cmpi eq, %arg1, %c1_i32 : i32
    %208 = arith.extui %207 : i1 to i32
    %c0_i32_91 = arith.constant 0 : i32
    %209 = arith.cmpi ne, %208, %c0_i32_91 : i32
    scf.if %209 {
      %c0_92 = arith.constant 0 : index
      %c0_93 = arith.constant 0 : index
      %210 = vector.load %arg12[%c0_92, %c0_93] : memref<2x32xf32, #tpu.memory_space<vmem>>, vector<2x32xf32>
      %211 = vector.extract_strided_slice %210 {offsets = [0, 0], sizes = [1, 32], strides = [1, 1]} : vector<2x32xf32> to vector<1x32xf32>
      %212 = vector.extract_strided_slice %210 {offsets = [1, 0], sizes = [1, 32], strides = [1, 1]} : vector<2x32xf32> to vector<1x32xf32>
      %cst_94 = arith.constant dense<0.000000e+00> : vector<16xf32>
      %213 = vector.multi_reduction <add>, %205, %cst_94 [1] : vector<16x32xf32> to vector<16xf32>
      %214 = vector.shape_cast %213 : vector<16xf32> to vector<16x1xf32>
      %cst_95 = arith.constant 3.200000e+01 : f32
      %215 = vector.broadcast %cst_95 : f32 to vector<16x1xf32>
      %216 = arith.divf %214, %215 : vector<16x1xf32>
      %217 = vector.broadcast %216 : vector<16x1xf32> to vector<16x32xf32>
      %218 = arith.subf %205, %217 : vector<16x32xf32>
      %219 = arith.mulf %218, %218 : vector<16x32xf32>
      %cst_96 = arith.constant dense<0.000000e+00> : vector<16xf32>
      %220 = vector.multi_reduction <add>, %219, %cst_96 [1] : vector<16x32xf32> to vector<16xf32>
      %221 = vector.shape_cast %220 : vector<16xf32> to vector<16x1xf32>
      %cst_97 = arith.constant 3.200000e+01 : f32
      %222 = vector.broadcast %cst_97 : f32 to vector<16x1xf32>
      %223 = arith.divf %221, %222 : vector<16x1xf32>
      %224 = vector.broadcast %216 : vector<16x1xf32> to vector<16x32xf32>
      %225 = arith.subf %205, %224 : vector<16x32xf32>
      %cst_98 = arith.constant 9.99999997E-7 : f32
      %226 = vector.broadcast %cst_98 : f32 to vector<16x1xf32>
      %227 = arith.addf %223, %226 : vector<16x1xf32>
      %228 = math.rsqrt %227 : vector<16x1xf32>
      %229 = vector.broadcast %228 : vector<16x1xf32> to vector<16x32xf32>
      %230 = arith.mulf %225, %229 : vector<16x32xf32>
      %231 = vector.broadcast %211 : vector<1x32xf32> to vector<16x32xf32>
      %232 = arith.mulf %230, %231 : vector<16x32xf32>
      %233 = vector.broadcast %212 : vector<1x32xf32> to vector<16x32xf32>
      %234 = arith.addf %232, %233 : vector<16x32xf32>
      %c0_99 = arith.constant 0 : index
      %c0_100 = arith.constant 0 : index
      %c0_101 = arith.constant 0 : index
      %235 = vector.load %arg13[%c0_99, %c0_100, %c0_101] : memref<1x16x32xf32, #tpu.memory_space<vmem>>, vector<1x16x32xf32>
      %236 = vector.shape_cast %235 : vector<1x16x32xf32> to vector<16x32xf32>
      %237 = vector.shape_cast %234 : vector<16x32xf32> to vector<1x16x32xf32>
      tpu.vector_store %arg13[%c0_99, %c0_100, %c0_101], %237 {strides = array<i32>} : memref<1x16x32xf32, #tpu.memory_space<vmem>>, vector<1x16x32xf32>,
    } else {
    }
    return
  }
  func.func @transform_0(%arg0: i32, %arg1: i32) -> (i32, i32, i32) {
    %c0_i32 = arith.constant 0 : i32
    %c0_i32_0 = arith.constant 0 : i32
    %c0_i32_1 = arith.constant 0 : i32
    return %arg0, %c0_i32, %c0_i32_0 : i32, i32, i32
  }
  func.func @transform_1(%arg0: i32, %arg1: i32) -> (i32, i32) {
    %c0_i32 = arith.constant 0 : i32
    %c0_i32_0 = arith.constant 0 : i32
    %c0_i32_1 = arith.constant 0 : i32
    return %c0_i32, %c0_i32_0 : i32, i32
  }
  func.func @transform_2(%arg0: i32, %arg1: i32) -> (i32, i32) {
    %c0_i32 = arith.constant 0 : i32
    %c0_i32_0 = arith.constant 0 : i32
    %c0_i32_1 = arith.constant 0 : i32
    return %c0_i32, %c0_i32_0 : i32, i32
  }
  func.func @transform_3(%arg0: i32, %arg1: i32) -> (i32, i32, i32) {
    %c0_i32 = arith.constant 0 : i32
    %c0_i32_0 = arith.constant 0 : i32
    %c0_i32_1 = arith.constant 0 : i32
    return %arg1, %c0_i32, %c0_i32_0 : i32, i32, i32
  }
  func.func @transform_4(%arg0: i32, %arg1: i32) -> (i32, i32, i32) {
    %c0_i32 = arith.constant 0 : i32
    %c0_i32_0 = arith.constant 0 : i32
    %c0_i32_1 = arith.constant 0 : i32
    return %arg1, %c0_i32, %c0_i32_0 : i32, i32, i32
  }
  func.func @transform_5(%arg0: i32, %arg1: i32) -> (i32, i32, i32) {
    %c0_i32 = arith.constant 0 : i32
    %c0_i32_0 = arith.constant 0 : i32
    %c0_i32_1 = arith.constant 0 : i32
    return %arg1, %c0_i32, %c0_i32_0 : i32, i32, i32
  }
  func.func @transform_6(%arg0: i32, %arg1: i32) -> (i32, i32, i32) {
    %c0_i32 = arith.constant 0 : i32
    %c0_i32_0 = arith.constant 0 : i32
    %c0_i32_1 = arith.constant 0 : i32
    return %arg1, %c0_i32, %c0_i32_0 : i32, i32, i32
  }
  func.func @transform_7(%arg0: i32, %arg1: i32) -> (i32, i32, i32) {
    %c0_i32 = arith.constant 0 : i32
    %c0_i32_0 = arith.constant 0 : i32
    %c0_i32_1 = arith.constant 0 : i32
    return %arg1, %c0_i32, %c0_i32_0 : i32, i32, i32
  }
  func.func @transform_8(%arg0: i32, %arg1: i32) -> (i32, i32, i32) {
    %c0_i32 = arith.constant 0 : i32
    %c0_i32_0 = arith.constant 0 : i32
    %c0_i32_1 = arith.constant 0 : i32
    return %arg1, %c0_i32, %c0_i32_0 : i32, i32, i32
  }
  func.func @transform_9(%arg0: i32, %arg1: i32) -> (i32, i32, i32) {
    %c0_i32 = arith.constant 0 : i32
    %c0_i32_0 = arith.constant 0 : i32
    %c0_i32_1 = arith.constant 0 : i32
    return %arg1, %c0_i32, %c0_i32_0 : i32, i32, i32
  }
  func.func @transform_10(%arg0: i32, %arg1: i32) -> (i32, i32) {
    %c0_i32 = arith.constant 0 : i32
    %c0_i32_0 = arith.constant 0 : i32
    %c0_i32_1 = arith.constant 0 : i32
    return %c0_i32, %c0_i32_0 : i32, i32
  }
  func.func @transform_11(%arg0: i32, %arg1: i32) -> (i32, i32, i32) {
    %c0_i32 = arith.constant 0 : i32
    %c0_i32_0 = arith.constant 0 : i32
    %c0_i32_1 = arith.constant 0 : i32
    return %arg0, %c0_i32, %c0_i32_0 : i32, i32, i32
  }
  func.func @transform_12(%arg0: i32, %arg1: i32) -> (i32, i32, i32, i32) {
    %c0_i32 = arith.constant 0 : i32
    %c0_i32_0 = arith.constant 0 : i32
    %c0_i32_1 = arith.constant 0 : i32
    return %arg1, %arg0, %c0_i32, %c0_i32_0 : i32, i32, i32, i32
  }
}

</mosaic_0001>

<llo_original>
// kernel: tpu_custom_call.1
$region0: #{tpu_custom_call.1}
  #allocation0 [shape = 'u32[]', space=smem, size = 0x4, offset = 0x4, fixed_abs, tag = 'smem constant byte address 0x4 - core index']
  #allocation1 [shape = 'u32[144,128]{1,0:T(1,128)}', space=vmem, size = 0x12000, scoped, tag = 'internal scratch']
  #allocation2 [shape = 'f32[16,32]{1,0:T(8,128)}', space=vmem, size = 0x2000, scoped, tag = 'scratch operand']
  #allocation3 [shape = 'f32[16,32]{1,0:T(8,128)}', space=vmem, size = 0x2000, scoped, tag = 'scratch operand']
  %s0 = inlined_call_operand.hbm [shape: f32[2,16,32], index: 0, kind: input, shape index: {}]
  %s1 = inlined_call_operand.hbm [shape: f32[32,32], index: 1, kind: input, shape index: {}]
  %s2 = inlined_call_operand.vmem [shape: f32[16,32], index: 2, kind: input, shape index: {}]
  %s3 = inlined_call_operand.vmem [shape: f32[2,6,32], index: 3, kind: input, shape index: {}]
  %s4 = inlined_call_operand.vmem [shape: f32[2,1,96], index: 4, kind: input, shape index: {}]
  %s5 = inlined_call_operand.vmem [shape: f32[2,1,64], index: 5, kind: input, shape index: {}]
  %s6 = inlined_call_operand.vmem [shape: f32[2,32,96], index: 6, kind: input, shape index: {}]
  %s7 = inlined_call_operand.vmem [shape: f32[2,32,32], index: 7, kind: input, shape index: {}]
  %s8 = inlined_call_operand.vmem [shape: f32[2,32,64], index: 8, kind: input, shape index: {}]
  %s9 = inlined_call_operand.vmem [shape: f32[2,64,32], index: 9, kind: input, shape index: {}]
  %s10 = inlined_call_operand.vmem [shape: f32[2,32], index: 10, kind: input, shape index: {}]
  %s11 = inlined_call_operand.hbm [shape: f32[2,16,32], index: 11, kind: output, shape index: {0}]
  %s12 = inlined_call_operand.hbm [shape: f32[2,8,16,16], index: 12, kind: output, shape index: {1}]
  %13 = xla_tuple %s11, %s12
  %s14 = sld [smem:[#allocation0]]
  $region101: #{tpu_custom_call.1} parent=0
    _
  %s16 = ssub.s32 1, %s14
  %s17 = scalar_select 0, %s16, %s14
  $region1: #{tpu_custom_call.1} parent=0
    #allocation4 [shape = 'u8[16384]{0}', space=vmem, size = 0x4000, scoped, tag = 'input window, operand 0']
    #allocation5 [shape = 's32[2]{0}', space=sflag, size = 0x8, scoped, tag = 'scoped memory for tpu_custom_call.1']
    #allocation6 [shape = 's32[2]{0}', space=sflag, size = 0x8, scoped, tag = 'scoped memory for tpu_custom_call.1']
    #allocation7 [shape = 'u8[16384]{0}', space=vmem, size = 0x4000, scoped, tag = 'input window, operand 1, single buffered']
    #allocation8 [shape = 's32[1]{0}', space=sflag, size = 0x4, scoped, tag = 'scoped memory for tpu_custom_call.1']
    #allocation9 [shape = 'u8[16384]{0}', space=vmem, size = 0x4000, scoped, tag = 'output window, operand 0']
    #allocation10 [shape = 'u8[65536]{0}', space=vmem, size = 0x10000, scoped, tag = 'output window, operand 1']
    #allocation11 [shape = 's32[2]{0}', space=sflag, size = 0x8, scoped, tag = 'scoped memory for tpu_custom_call.1']
    %18 = vsyncpa [#allocation5], 0
    %s19 = scalar_lea.sflag [#allocation5], 1
    %20 = vsyncpa %s19, 0
    %21 = vsyncpa [#allocation8], 0
    %22 = vsyncpa [#allocation6], 0
    %s23 = scalar_lea.sflag [#allocation6], 1
    %24 = vsyncpa %s23, 0
    %25 = vsyncpa [#allocation11], 0
    %s26 = scalar_lea.sflag [#allocation11], 1
    %27 = vsyncpa %s26, 0
    loop: start=0, step=1, limit=6
    $region2: #{tpu_custom_call.1} parent=1 // loop_pre_header
      _
    $region3: #{tpu_custom_call.1} parent=1 // loop_header
      %s29 = sphi 0, %s33
      %p30 = scmp.ge.s32.totalorder %s29, 6
      %s36 = sphi 0, %s48
      %s37 = sphi 0, %s44
      %s38 = sphi 0, %s36
      %s39 = sphi 0, %s37
      %s40 = sphi 0, %s38
      %s41 = sphi 0, %s39
      %s51 = sphi 0, %s53
      %s54 = sphi 0, %s51
      %s55 = sphi 0, %s54
      %s71 = sphi 0, %s55
      %s75 = sphi 0, %s75
      %s77 = sphi 0, %s75
      %s78 = sphi 0, %s77
      %s92 = sphi 0, %s78
      %s96 = sphi 0, %s96
      %s98 = sphi 0, %s96
      %s99 = sphi 0, %s98
      %s113 = sphi 0, %s99
      %s119 = sphi 0, %s121
      %s122 = sphi 0, %s119
      %s123 = sphi 0, %s122
      %s139 = sphi 0, %s123
      %s145 = sphi 0, %s147
      %s148 = sphi 0, %s145
      %s149 = sphi 0, %s148
      %s165 = sphi 0, %s149
      %s171 = sphi 0, %s173
      %s174 = sphi 0, %s171
      %s175 = sphi 0, %s174
      %s191 = sphi 0, %s175
      %s197 = sphi 0, %s199
      %s200 = sphi 0, %s197
      %s201 = sphi 0, %s200
      %s217 = sphi 0, %s201
      %s223 = sphi 0, %s225
      %s226 = sphi 0, %s223
      %s227 = sphi 0, %s226
      %s243 = sphi 0, %s227
      %s249 = sphi 0, %s251
      %s252 = sphi 0, %s249
      %s253 = sphi 0, %s252
      %s269 = sphi 0, %s253
      %s275 = sphi 0, %s277
      %s278 = sphi 0, %s275
      %s279 = sphi 0, %s278
      %s295 = sphi 0, %s279
      %s299 = sphi 0, %s299
      %s301 = sphi 0, %s299
      %s302 = sphi 0, %s301
      %s316 = sphi 0, %s302
      %s322 = sphi 0, %s324
      %s325 = sphi 0, %s322
      %s326 = sphi 0, %s325
      %s342 = sphi 0, %s326
      %s350 = sphi 0, %s352
      %s353 = sphi 0, %s350
      %s354 = sphi 0, %s353
      %s370 = sphi 0, %s354
    $region4: #{tpu_custom_call.1} parent=1 // loop_header_branch
      %32 = sbr.rel (%p30) target = $region8
    $region5: #{tpu_custom_call.1} parent=1 // loop_body
      %s34 = ssub.s32 %s29, 1
      %s35 = ssub.s32 %s29, 2
      %s42 = sadd.s32 1, %s37
      %p43 = scmp.ge.s32.totalorder %s42, 2
      %s44 = scalar_select %p43, 0, %s42
      %s45 = sadd.s32 1, %s36
      %s46 = scalar_select %p43, %s45, %s36
      %p47 = scmp.ge.s32.totalorder %s46, 2
      %s48 = scalar_select %p47, 0, %s46
      %s49 = ssub.s32 %s36, %s48
      %p50 = scmp.eq.s32.totalorder %s49, 0
      %s52 = sadd.s32 %s51, 1
      %s53 = scalar_select %p50, %s51, %s52
      %p56 = pneg %p50
      %p57 = scmp.eq.s32.totalorder %s29, 3
      %p58 = por %p56, %p57
      %p59 = scmp.ne.s32.totalorder %s51, %s54
      %p60 = scmp.eq.s32.totalorder %s29, 0
      %p61 = por %p59, %p60
      %p62 = scmp.ne.s32.totalorder %s51, %s54
      %p63 = scmp.eq.s32.totalorder %s34, 3
      %p64 = por %p62, %p63
      %p65 = scmp.ne.s32.totalorder %s54, %s55
      %p66 = scmp.eq.s32.totalorder %s34, 0
      %p67 = por %p65, %p66
      %p68 = scmp.ne.s32.totalorder %s54, %s55
      %p69 = scmp.eq.s32.totalorder %s35, 3
      %p70 = por %p68, %p69
      %p72 = scmp.ne.s32.totalorder %s55, %s71
      %p73 = scmp.eq.s32.totalorder %s35, 0
      %p74 = por %p72, %p73
      %s76 = sadd.s32 %s75, 1
      %p79 = scmp.eq.s32.totalorder %s29, 3
      %p80 = scmp.ne.s32.totalorder %s75, %s77
      %p81 = scmp.eq.s32.totalorder %s29, 0
      %p82 = por %p80, %p81
      %p83 = scmp.ne.s32.totalorder %s75, %s77
      %p84 = scmp.eq.s32.totalorder %s34, 3
      %p85 = por %p83, %p84
      %p86 = scmp.ne.s32.totalorder %s77, %s78
      %p87 = scmp.eq.s32.totalorder %s34, 0
      %p88 = por %p86, %p87
      %p89 = scmp.ne.s32.totalorder %s77, %s78
      %p90 = scmp.eq.s32.totalorder %s35, 3
      %p91 = por %p89, %p90
      %p93 = scmp.ne.s32.totalorder %s78, %s92
      %p94 = scmp.eq.s32.totalorder %s35, 0
      %p95 = por %p93, %p94
      %s97 = sadd.s32 %s96, 1
      %p100 = scmp.eq.s32.totalorder %s29, 3
      %p101 = scmp.ne.s32.totalorder %s96, %s98
      %p102 = scmp.eq.s32.totalorder %s29, 0
      %p103 = por %p101, %p102
      %p104 = scmp.ne.s32.totalorder %s96, %s98
      %p105 = scmp.eq.s32.totalorder %s34, 3
      %p106 = por %p104, %p105
      %p107 = scmp.ne.s32.totalorder %s98, %s99
      %p108 = scmp.eq.s32.totalorder %s34, 0
      %p109 = por %p107, %p108
      %p110 = scmp.ne.s32.totalorder %s98, %s99
      %p111 = scmp.eq.s32.totalorder %s35, 3
      %p112 = por %p110, %p111
      %p114 = scmp.ne.s32.totalorder %s99, %s113
      %p115 = scmp.eq.s32.totalorder %s35, 0
      %p116 = por %p114, %p115
      %s117 = ssub.s32 %s37, %s44
      %p118 = scmp.eq.s32.totalorder %s117, 0
      %s120 = sadd.s32 %s119, 1
      %s121 = scalar_select %p118, %s119, %s120
      %p124 = pneg %p118
      %p125 = scmp.eq.s32.totalorder %s29, 3
      %p126 = por %p124, %p125
      %p127 = scmp.ne.s32.totalorder %s119, %s122
      %p128 = scmp.eq.s32.totalorder %s29, 0
      %p129 = por %p127, %p128
      %p130 = scmp.ne.s32.totalorder %s119, %s122
      %p131 = scmp.eq.s32.totalorder %s34, 3
      %p132 = por %p130, %p131
      %p133 = scmp.ne.s32.totalorder %s122, %s123
      %p134 = scmp.eq.s32.totalorder %s34, 0
      %p135 = por %p133, %p134
      %p136 = scmp.ne.s32.totalorder %s122, %s123
      %p137 = scmp.eq.s32.totalorder %s35, 3
      %p138 = por %p136, %p137
      %p140 = scmp.ne.s32.totalorder %s123, %s139
      %p141 = scmp.eq.s32.totalorder %s35, 0
      %p142 = por %p140, %p141
      %s143 = ssub.s32 %s37, %s44
      %p144 = scmp.eq.s32.totalorder %s143, 0
      %s146 = sadd.s32 %s145, 1
      %s147 = scalar_select %p144, %s145, %s146
      %p150 = pneg %p144
      %p151 = scmp.eq.s32.totalorder %s29, 3
      %p152 = por %p150, %p151
      %p153 = scmp.ne.s32.totalorder %s145, %s148
      %p154 = scmp.eq.s32.totalorder %s29, 0
      %p155 = por %p153, %p154
      %p156 = scmp.ne.s32.totalorder %s145, %s148
      %p157 = scmp.eq.s32.totalorder %s34, 3
      %p158 = por %p156, %p157
      %p159 = scmp.ne.s32.totalorder %s148, %s149
      %p160 = scmp.eq.s32.totalorder %s34, 0
      %p161 = por %p159, %p160
      %p162 = scmp.ne.s32.totalorder %s148, %s149
      %p163 = scmp.eq.s32.totalorder %s35, 3
      %p164 = por %p162, %p163
      %p166 = scmp.ne.s32.totalorder %s149, %s165
      %p167 = scmp.eq.s32.totalorder %s35, 0
      %p168 = por %p166, %p167
      %s169 = ssub.s32 %s37, %s44
      %p170 = scmp.eq.s32.totalorder %s169, 0
      %s172 = sadd.s32 %s171, 1
      %s173 = scalar_select %p170, %s171, %s172
      %p176 = pneg %p170
      %p177 = scmp.eq.s32.totalorder %s29, 3
      %p178 = por %p176, %p177
      %p179 = scmp.ne.s32.totalorder %s171, %s174
      %p180 = scmp.eq.s32.totalorder %s29, 0
      %p181 = por %p179, %p180
      %p182 = scmp.ne.s32.totalorder %s171, %s174
      %p183 = scmp.eq.s32.totalorder %s34, 3
      %p184 = por %p182, %p183
      %p185 = scmp.ne.s32.totalorder %s174, %s175
      %p186 = scmp.eq.s32.totalorder %s34, 0
      %p187 = por %p185, %p186
      %p188 = scmp.ne.s32.totalorder %s174, %s175
      %p189 = scmp.eq.s32.totalorder %s35, 3
      %p190 = por %p188, %p189
      %p192 = scmp.ne.s32.totalorder %s175, %s191
      %p193 = scmp.eq.s32.totalorder %s35, 0
      %p194 = por %p192, %p193
      %s195 = ssub.s32 %s37, %s44
      %p196 = scmp.eq.s32.totalorder %s195, 0
      %s198 = sadd.s32 %s197, 1
      %s199 = scalar_select %p196, %s197, %s198
      %p202 = pneg %p196
      %p203 = scmp.eq.s32.totalorder %s29, 3
      %p204 = por %p202, %p203
      %p205 = scmp.ne.s32.totalorder %s197, %s200
      %p206 = scmp.eq.s32.totalorder %s29, 0
      %p207 = por %p205, %p206
      %p208 = scmp.ne.s32.totalorder %s197, %s200
      %p209 = scmp.eq.s32.totalorder %s34, 3
      %p210 = por %p208, %p209
      %p211 = scmp.ne.s32.totalorder %s200, %s201
      %p212 = scmp.eq.s32.totalorder %s34, 0
      %p213 = por %p211, %p212
      %p214 = scmp.ne.s32.totalorder %s200, %s201
      %p215 = scmp.eq.s32.totalorder %s35, 3
      %p216 = por %p214, %p215
      %p218 = scmp.ne.s32.totalorder %s201, %s217
      %p219 = scmp.eq.s32.totalorder %s35, 0
      %p220 = por %p218, %p219
      %s221 = ssub.s32 %s37, %s44
      %p222 = scmp.eq.s32.totalorder %s221, 0
      %s224 = sadd.s32 %s223, 1
      %s225 = scalar_select %p222, %s223, %s224
      %p228 = pneg %p222
      %p229 = scmp.eq.s32.totalorder %s29, 3
      %p230 = por %p228, %p229
      %p231 = scmp.ne.s32.totalorder %s223, %s226
      %p232 = scmp.eq.s32.totalorder %s29, 0
      %p233 = por %p231, %p232
      %p234 = scmp.ne.s32.totalorder %s223, %s226
      %p235 = scmp.eq.s32.totalorder %s34, 3
      %p236 = por %p234, %p235
      %p237 = scmp.ne.s32.totalorder %s226, %s227
      %p238 = scmp.eq.s32.totalorder %s34, 0
      %p239 = por %p237, %p238
      %p240 = scmp.ne.s32.totalorder %s226, %s227
      %p241 = scmp.eq.s32.totalorder %s35, 3
      %p242 = por %p240, %p241
      %p244 = scmp.ne.s32.totalorder %s227, %s243
      %p245 = scmp.eq.s32.totalorder %s35, 0
      %p246 = por %p244, %p245
      %s247 = ssub.s32 %s37, %s44
      %p248 = scmp.eq.s32.totalorder %s247, 0
      %s250 = sadd.s32 %s249, 1
      %s251 = scalar_select %p248, %s249, %s250
      %p254 = pneg %p248
      %p255 = scmp.eq.s32.totalorder %s29, 3
      %p256 = por %p254, %p255
      %p257 = scmp.ne.s32.totalorder %s249, %s252
      %p258 = scmp.eq.s32.totalorder %s29, 0
      %p259 = por %p257, %p258
      %p260 = scmp.ne.s32.totalorder %s249, %s252
      %p261 = scmp.eq.s32.totalorder %s34, 3
      %p262 = por %p260, %p261
      %p263 = scmp.ne.s32.totalorder %s252, %s253
      %p264 = scmp.eq.s32.totalorder %s34, 0
      %p265 = por %p263, %p264
      %p266 = scmp.ne.s32.totalorder %s252, %s253
      %p267 = scmp.eq.s32.totalorder %s35, 3
      %p268 = por %p266, %p267
      %p270 = scmp.ne.s32.totalorder %s253, %s269
      %p271 = scmp.eq.s32.totalorder %s35, 0
      %p272 = por %p270, %p271
      %s273 = ssub.s32 %s37, %s44
      %p274 = scmp.eq.s32.totalorder %s273, 0
      %s276 = sadd.s32 %s275, 1
      %s277 = scalar_select %p274, %s275, %s276
      %p280 = pneg %p274
      %p281 = scmp.eq.s32.totalorder %s29, 3
      %p282 = por %p280, %p281
      %p283 = scmp.ne.s32.totalorder %s275, %s278
      %p284 = scmp.eq.s32.totalorder %s29, 0
      %p285 = por %p283, %p284
      %p286 = scmp.ne.s32.totalorder %s275, %s278
      %p287 = scmp.eq.s32.totalorder %s34, 3
      %p288 = por %p286, %p287
      %p289 = scmp.ne.s32.totalorder %s278, %s279
      %p290 = scmp.eq.s32.totalorder %s34, 0
      %p291 = por %p289, %p290
      %p292 = scmp.ne.s32.totalorder %s278, %s279
      %p293 = scmp.eq.s32.totalorder %s35, 3
      %p294 = por %p292, %p293
      %p296 = scmp.ne.s32.totalorder %s279, %s295
      %p297 = scmp.eq.s32.totalorder %s35, 0
      %p298 = por %p296, %p297
      %s300 = sadd.s32 %s299, 1
      %p303 = scmp.eq.s32.totalorder %s29, 3
      %p304 = scmp.ne.s32.totalorder %s299, %s301
      %p305 = scmp.eq.s32.totalorder %s29, 0
      %p306 = por %p304, %p305
      %p307 = scmp.ne.s32.totalorder %s299, %s301
      %p308 = scmp.eq.s32.totalorder %s34, 3
      %p309 = por %p307, %p308
      %p310 = scmp.ne.s32.totalorder %s301, %s302
      %p311 = scmp.eq.s32.totalorder %s34, 0
      %p312 = por %p310, %p311
      %p313 = scmp.ne.s32.totalorder %s301, %s302
      %p314 = scmp.eq.s32.totalorder %s35, 3
      %p315 = por %p313, %p314
      %p317 = scmp.ne.s32.totalorder %s302, %s316
      %p318 = scmp.eq.s32.totalorder %s35, 0
      %p319 = por %p317, %p318
      %s320 = ssub.s32 %s36, %s48
      %p321 = scmp.eq.s32.totalorder %s320, 0
      %s323 = sadd.s32 %s322, 1
      %s324 = scalar_select %p321, %s322, %s323
      %p327 = pneg %p321
      %p328 = scmp.eq.s32.totalorder %s29, 3
      %p329 = por %p327, %p328
      %p330 = scmp.ne.s32.totalorder %s322, %s325
      %p331 = scmp.eq.s32.totalorder %s29, 0
      %p332 = por %p330, %p331
      %p333 = scmp.ne.s32.totalorder %s322, %s325
      %p334 = scmp.eq.s32.totalorder %s34, 3
      %p335 = por %p333, %p334
      %p336 = scmp.ne.s32.totalorder %s325, %s326
      %p337 = scmp.eq.s32.totalorder %s34, 0
      %p338 = por %p336, %p337
      %p339 = scmp.ne.s32.totalorder %s325, %s326
      %p340 = scmp.eq.s32.totalorder %s35, 3
      %p341 = por %p339, %p340
      %p343 = scmp.ne.s32.totalorder %s326, %s342
      %p344 = scmp.eq.s32.totalorder %s35, 0
      %p345 = por %p343, %p344
      %s346 = ssub.s32 %s37, %s44
      %s347 = ssub.s32 %s36, %s48
      %s348 = sor.u32 %s346, %s347
      %p349 = scmp.eq.s32.totalorder %s348, 0
      %s351 = sadd.s32 %s350, 1
      %s352 = scalar_select %p349, %s350, %s351
      %p355 = pneg %p349
      %p356 = scmp.eq.s32.totalorder %s29, 3
      %p357 = por %p355, %p356
      %p358 = scmp.ne.s32.totalorder %s350, %s353
      %p359 = scmp.eq.s32.totalorder %s29, 0
      %p360 = por %p358, %p359
      %p361 = scmp.ne.s32.totalorder %s350, %s353
      %p362 = scmp.eq.s32.totalorder %s34, 3
      %p363 = por %p361, %p362
      %p364 = scmp.ne.s32.totalorder %s353, %s354
      %p365 = scmp.eq.s32.totalorder %s34, 0
      %p366 = por %p364, %p365
      %p367 = scmp.ne.s32.totalorder %s353, %s354
      %p368 = scmp.eq.s32.totalorder %s35, 3
      %p369 = por %p367, %p368
      %p371 = scmp.ne.s32.totalorder %s354, %s370
      %p372 = scmp.eq.s32.totalorder %s35, 0
      %p373 = por %p371, %p372
      %p374 = scmp.le.s32.totalorder 1, %s29
      %p375 = scmp.lt.s32.totalorder %s29, 5
      %p376 = pnand %p374, %p375
      %p377 = pneg %p376
      // Predicated region
      $region9: #{tpu_custom_call.1} parent=5 // pred_check
        _
      $region10: #{tpu_custom_call.1} parent=5 // pred_check_branch
        %379 = sbr.rel (%p376) target = $region12
      $region11: #{tpu_custom_call.1} parent=5 // pred_region
        %s380 = ssub.s32 %s29, 1
        // Predicated region
        $region13: #{tpu_custom_call.1} parent=11 // pred_check
          %p381 = pneg %p88
        $region14: #{tpu_custom_call.1} parent=11 // pred_check_branch
          %383 = sbr.rel (%p381) target = $region16
        $region15: #{tpu_custom_call.1} parent=11 // pred_region
          %s385 = ssub.s32 512, 512
          %386 = vsyncadd [#allocation8], %s385
          %s387 = sshll.u32 [#allocation7], 4
          %s388 = int_to_ptr.vmem [resolvable:$true] %s387
          %393 = dma.hbm_to_vmem [thread:$0]  %s1, 512, %s388, [#allocation8], 128, 128, 8
        $region16: #{tpu_custom_call.1} parent=11 // pred_fallthru
          _
        // Predicated region
        $region17: #{tpu_custom_call.1} parent=11 // pred_check
          %p394 = pneg %p109
        $region18: #{tpu_custom_call.1} parent=11 // pred_check_branch
          %396 = sbr.rel (%p394) target = $region20
        $region19: #{tpu_custom_call.1} parent=11 // pred_region
          _
        $region20: #{tpu_custom_call.1} parent=11 // pred_fallthru
          _
        // Predicated region
        $region21: #{tpu_custom_call.1} parent=11 // pred_check
          %p397 = pneg %p312
        $region22: #{tpu_custom_call.1} parent=11 // pred_check_branch
          %399 = sbr.rel (%p397) target = $region24
        $region23: #{tpu_custom_call.1} parent=11 // pred_region
          _
        $region24: #{tpu_custom_call.1} parent=11 // pred_fallthru
          _
      $region12: #{tpu_custom_call.1} parent=5 // pred_fallthru
        _
      %p400 = scmp.lt.s32.totalorder %s29, 4
      // Predicated region
      $region25: #{tpu_custom_call.1} parent=5 // pred_check
        %p401 = pneg %p400
      $region26: #{tpu_custom_call.1} parent=5 // pred_check_branch
        %403 = sbr.rel (%p401) target = $region28
      $region27: #{tpu_custom_call.1} parent=5 // pred_region
        // Predicated region
        $region29: #{tpu_custom_call.1} parent=27 // pred_check
          %p404 = pneg %p61
        $region30: #{tpu_custom_call.1} parent=27 // pred_check_branch
          %406 = sbr.rel (%p404) target = $region32
        $region31: #{tpu_custom_call.1} parent=27 // pred_region
          %s407 = sand.u32 %s51, 1
          %s408 = scalar_lea.sflag [#allocation5], %s407
          %s409 = sand.u32 %s51, 1
          %s410 = smul.addr %s409, 16
          %s411 = scalar_lea.vmem [#allocation4], %s410
          %s413 = ssub.s32 256, 256
          %414 = vsyncadd %s408, %s413
          %s415 = smul.addr %s36, 2
          %s416 = smul.addr %s415, 128
          %s417 = scalar_lea.hbm %s0, %s416
          %s418 = sshll.u32 %s411, 4
          %s419 = int_to_ptr.vmem [resolvable:$true] %s418
          %424 = dma.hbm_to_vmem [thread:$0]  %s417, 256, %s419, %s408, 128, 128, 8
        $region32: #{tpu_custom_call.1} parent=27 // pred_fallthru
          _
        // Predicated region
        $region33: #{tpu_custom_call.1} parent=27 // pred_check
          %p425 = pneg %p129
        $region34: #{tpu_custom_call.1} parent=27 // pred_check_branch
          %427 = sbr.rel (%p425) target = $region36
        $region35: #{tpu_custom_call.1} parent=27 // pred_region
          %p428 = scmp.lt.s32.totalorder %s37, 1
          %s429 = scalar_select %p428, %s37, 1
          %s430 = smul.addr %s429, 8
          %s431 = scalar_lea.vmem %s3, %s430
        $region36: #{tpu_custom_call.1} parent=27 // pred_fallthru
          _
        // Predicated region
        $region37: #{tpu_custom_call.1} parent=27 // pred_check
          %p432 = pneg %p155
        $region38: #{tpu_custom_call.1} parent=27 // pred_check_branch
          %434 = sbr.rel (%p432) target = $region40
        $region39: #{tpu_custom_call.1} parent=27 // pred_region
          %p435 = scmp.lt.s32.totalorder %s37, 1
          %s436 = scalar_select %p435, %s37, 1
          %s437 = scalar_lea.vmem %s4, %s436
        $region40: #{tpu_custom_call.1} parent=27 // pred_fallthru
          _
        // Predicated region
        $region41: #{tpu_custom_call.1} parent=27 // pred_check
          %p438 = pneg %p181
        $region42: #{tpu_custom_call.1} parent=27 // pred_check_branch
          %440 = sbr.rel (%p438) target = $region44
        $region43: #{tpu_custom_call.1} parent=27 // pred_region
          %p441 = scmp.lt.s32.totalorder %s37, 1
          %s442 = scalar_select %p441, %s37, 1
          %s443 = scalar_lea.vmem %s5, %s442
        $region44: #{tpu_custom_call.1} parent=27 // pred_fallthru
          _
        // Predicated region
        $region45: #{tpu_custom_call.1} parent=27 // pred_check
          %p444 = pneg %p207
        $region46: #{tpu_custom_call.1} parent=27 // pred_check_branch
          %446 = sbr.rel (%p444) target = $region48
        $region47: #{tpu_custom_call.1} parent=27 // pred_region
          %p447 = scmp.lt.s32.totalorder %s37, 1
          %s448 = scalar_select %p447, %s37, 1
          %s449 = smul.addr %s448, 4
          %s450 = smul.addr %s449, 8
          %s451 = scalar_lea.vmem %s6, %s450
        $region48: #{tpu_custom_call.1} parent=27 // pred_fallthru
          _
        // Predicated region
        $region49: #{tpu_custom_call.1} parent=27 // pred_check
          %p452 = pneg %p233
        $region50: #{tpu_custom_call.1} parent=27 // pred_check_branch
          %454 = sbr.rel (%p452) target = $region52
        $region51: #{tpu_custom_call.1} parent=27 // pred_region
          %p455 = scmp.lt.s32.totalorder %s37, 1
          %s456 = scalar_select %p455, %s37, 1
          %s457 = smul.addr %s456, 4
          %s458 = smul.addr %s457, 8
          %s459 = scalar_lea.vmem %s7, %s458
        $region52: #{tpu_custom_call.1} parent=27 // pred_fallthru
          _
        // Predicated region
        $region53: #{tpu_custom_call.1} parent=27 // pred_check
          %p460 = pneg %p259
        $region54: #{tpu_custom_call.1} parent=27 // pred_check_branch
          %462 = sbr.rel (%p460) target = $region56
        $region55: #{tpu_custom_call.1} parent=27 // pred_region
          %p463 = scmp.lt.s32.totalorder %s37, 1
          %s464 = scalar_select %p463, %s37, 1
          %s465 = smul.addr %s464, 4
          %s466 = smul.addr %s465, 8
          %s467 = scalar_lea.vmem %s8, %s466
        $region56: #{tpu_custom_call.1} parent=27 // pred_fallthru
          _
        // Predicated region
        $region57: #{tpu_custom_call.1} parent=27 // pred_check
          %p468 = pneg %p285
        $region58: #{tpu_custom_call.1} parent=27 // pred_check_branch
          %470 = sbr.rel (%p468) target = $region60
        $region59: #{tpu_custom_call.1} parent=27 // pred_region
          %p471 = scmp.lt.s32.totalorder %s37, 1
          %s472 = scalar_select %p471, %s37, 1
          %s473 = smul.addr %s472, 8
          %s474 = smul.addr %s473, 8
          %s475 = scalar_lea.vmem %s9, %s474
        $region60: #{tpu_custom_call.1} parent=27 // pred_fallthru
          _
      $region28: #{tpu_custom_call.1} parent=5 // pred_fallthru
        _
      %p476 = scmp.le.s32.totalorder 1, %s29
      %p477 = scmp.lt.s32.totalorder %s29, 5
      %p478 = pnand %p476, %p477
      %p479 = pneg %p478
      // Predicated region
      $region61: #{tpu_custom_call.1} parent=5 // pred_check
        _
      $region62: #{tpu_custom_call.1} parent=5 // pred_check_branch
        %481 = sbr.rel (%p478) target = $region64
      $region63: #{tpu_custom_call.1} parent=5 // pred_region
        %s482 = ssub.s32 %s29, 1
        %s483 = sand.u32 %s54, 1
        %s484 = scalar_lea.sflag [#allocation5], %s483
        %s485 = sand.u32 %s54, 1
        %s486 = smul.addr %s485, 16
        %s487 = scalar_lea.vmem [#allocation4], %s486
        // Predicated region
        $region65: #{tpu_custom_call.1} parent=63 // pred_check
          %p488 = pneg %p67
        $region66: #{tpu_custom_call.1} parent=63 // pred_check_branch
          %490 = sbr.rel (%p488) target = $region68
        $region67: #{tpu_custom_call.1} parent=63 // pred_region
          %491 = dma.done %s484, 256
        $region68: #{tpu_custom_call.1} parent=63 // pred_fallthru
          _
        // Predicated region
        $region69: #{tpu_custom_call.1} parent=63 // pred_check
          %p492 = pneg %p88
        $region70: #{tpu_custom_call.1} parent=63 // pred_check_branch
          %494 = sbr.rel (%p492) target = $region72
        $region71: #{tpu_custom_call.1} parent=63 // pred_region
          %495 = dma.done [#allocation8], 512
        $region72: #{tpu_custom_call.1} parent=63 // pred_fallthru
          _
        %s496 = sand.u32 %s54, 1
        %s497 = scalar_lea.sflag [#allocation5], %s496
        %s498 = sand.u32 %s54, 1
        %s499 = smul.addr %s498, 16
        %s500 = scalar_lea.vmem [#allocation4], %s499
        %p501 = pneg %p67
        %p502 = pneg %p64
        %p503 = pneg %p88
        %p504 = pneg %p85
        %p505 = pneg %p109
        %p506 = pneg %p106
        %p507 = scmp.lt.s32.totalorder %s39, 1
        %s508 = scalar_select %p507, %s39, 1
        %s509 = smul.addr %s508, 8
        %s510 = scalar_lea.vmem %s3, %s509
        %p511 = pneg %p135
        %p512 = pneg %p132
        %p513 = scmp.lt.s32.totalorder %s39, 1
        %s514 = scalar_select %p513, %s39, 1
        %s515 = scalar_lea.vmem %s4, %s514
        %p516 = pneg %p161
        %p517 = pneg %p158
        %p518 = scmp.lt.s32.totalorder %s39, 1
        %s519 = scalar_select %p518, %s39, 1
        %s520 = scalar_lea.vmem %s5, %s519
        %p521 = pneg %p187
        %p522 = pneg %p184
        %p523 = scmp.lt.s32.totalorder %s39, 1
        %s524 = scalar_select %p523, %s39, 1
        %s525 = smul.addr %s524, 4
        %s526 = smul.addr %s525, 8
        %s527 = scalar_lea.vmem %s6, %s526
        %p528 = pneg %p213
        %p529 = pneg %p210
        %p530 = scmp.lt.s32.totalorder %s39, 1
        %s531 = scalar_select %p530, %s39, 1
        %s532 = smul.addr %s531, 4
        %s533 = smul.addr %s532, 8
        %s534 = scalar_lea.vmem %s7, %s533
        %p535 = pneg %p239
        %p536 = pneg %p236
        %p537 = scmp.lt.s32.totalorder %s39, 1
        %s538 = scalar_select %p537, %s39, 1
        %s539 = smul.addr %s538, 4
        %s540 = smul.addr %s539, 8
        %s541 = scalar_lea.vmem %s8, %s540
        %p542 = pneg %p265
        %p543 = pneg %p262
        %p544 = scmp.lt.s32.totalorder %s39, 1
        %s545 = scalar_select %p544, %s39, 1
        %s546 = smul.addr %s545, 8
        %s547 = smul.addr %s546, 8
        %s548 = scalar_lea.vmem %s9, %s547
        %p549 = pneg %p291
        %p550 = pneg %p288
        %p551 = pneg %p312
        %p552 = pneg %p309
        %p553 = pneg %p338
        %p554 = pneg %p335
        %s555 = sand.u32 %s325, 1
        %s556 = scalar_lea.sflag [#allocation6], %s555
        %s557 = sand.u32 %s325, 1
        %s558 = smul.addr %s557, 16
        %s559 = scalar_lea.vmem [#allocation9], %s558
        %p560 = pneg %p366
        %p561 = pneg %p363
        %s562 = sand.u32 %s353, 1
        %s563 = scalar_lea.sflag [#allocation11], %s562
        %s564 = sand.u32 %s353, 1
        %s565 = smul.addr %s564, 64
        %s566 = scalar_lea.vmem [#allocation10], %s565
        %p567 = scmp.lt.s32.totalorder %s39, 1
        %s568 = scalar_select %p567, %s39, 1
        %s569 = smul.addr %s568, 8
        %s570 = scalar_lea.vmem %s3, %s569
        %p571 = scmp.lt.s32.totalorder %s39, 1
        %s572 = scalar_select %p571, %s39, 1
        %s573 = scalar_lea.vmem %s4, %s572
        %p574 = scmp.lt.s32.totalorder %s39, 1
        %s575 = scalar_select %p574, %s39, 1
        %s576 = scalar_lea.vmem %s5, %s575
        %p577 = scmp.lt.s32.totalorder %s39, 1
        %s578 = scalar_select %p577, %s39, 1
        %s579 = smul.addr %s578, 4
        %s580 = smul.addr %s579, 8
        %s581 = scalar_lea.vmem %s6, %s580
        %p582 = scmp.lt.s32.totalorder %s39, 1
        %s583 = scalar_select %p582, %s39, 1
        %s584 = smul.addr %s583, 4
        %s585 = smul.addr %s584, 8
        %s586 = scalar_lea.vmem %s7, %s585
        %p587 = scmp.lt.s32.totalorder %s39, 1
        %s588 = scalar_select %p587, %s39, 1
        %s589 = smul.addr %s588, 4
        %s590 = smul.addr %s589, 8
        %s591 = scalar_lea.vmem %s8, %s590
        %p592 = scmp.lt.s32.totalorder %s39, 1
        %s593 = scalar_select %p592, %s39, 1
        %s594 = smul.addr %s593, 8
        %s595 = smul.addr %s594, 8
        %s596 = scalar_lea.vmem %s9, %s595
        %s597 = smul.u32 4, %s38
        %p598 = scmp.eq.s32.totalorder %s39, 0
        // Predicated region
        $region73: #{tpu_custom_call.1} parent=63 // pred_check
          %p599 = pneg %p598
        $region74: #{tpu_custom_call.1} parent=63 // pred_check_branch
          %601 = sbr.rel (%p599) target = $region76
        $region75: #{tpu_custom_call.1} parent=63 // pred_region
          %v602 = vld [vmem:[%s487] sm:$0xff]
          %v603 = vld [vmem:[%s487 + $0x8] sm:$0xff]
          %v604 = vld [vmem:[#allocation7] sm:$0xff]
          %v605 = vld [vmem:[#allocation7 + $0x8] sm:$0xff]
          %v606 = vld [vmem:[#allocation7 + $0x10] sm:$0xff]
          %v607 = vld [vmem:[#allocation7 + $0x18] sm:$0xff]
          %v608 = vld [vmem:[%s2] sm:$0xff]
          %v609 = vld [vmem:[%s2 + $0x8] sm:$0xff]
          %vm610 = vcmask 261120
          %v612 = vsel %vm610, %v602, 0
          %v615 = vsel %vm610, %v603, 0
          %617 = vmatprep.subr.mxu0 0.0
          %618 = vmatpush1.msra.mxu0 0.0
          %619 = vmatprep.subr.mxu0 0.0
          %620 = vmatpush1.msra.mxu0 0.0
          %621 = vmatprep.subr.mxu0 0.0
          %622 = vmatpush1.msra.mxu0 0.0
          %623 = vmatprep.subr.mxu0 0.0
          %624 = vmatpush1.msra.mxu0 0.0
          %625 = vmatprep.subr.mxu0 0.0
          %626 = vmatpush1.msra.mxu0 0.0
          %627 = vmatprep.subr.mxu0 0.0
          %628 = vmatpush1.msra.mxu0 0.0
          %629 = vmatprep.subr.mxu0 0.0
          %630 = vmatpush1.msra.mxu0 0.0
          %631 = vmatprep.subr.mxu0 0.0
          %632 = vmatpush1.msra.mxu0 0.0
          %633 = vmatprep.subr.mxu0 0.0
          %634 = vmatpush1.msra.mxu0 0.0
          %635 = vmatprep.subr.mxu0 0.0
          %636 = vmatpush1.msra.mxu0 0.0
          %637 = vmatprep.subr.mxu0 0.0
          %638 = vmatpush1.msra.mxu0 0.0
          %639 = vmatprep.subr.mxu0 0.0
          %640 = vmatpush1.msra.mxu0 0.0
          %641 = vmatprep.subr.mxu0 0.0
          %642 = vmatpush1.msra.mxu0 %v607
          %643 = vmatprep.subr.mxu0 0.0
          %644 = vmatpush1.msra.mxu0 %v606
          %645 = vmatprep.subr.mxu0 0.0
          %646 = vmatpush1.msra.mxu0 %v605
          %647 = vmatprep.subr.mxu0 0.0
          %648 = vmatpush1.msra.mxu0 %v604
          %649 = vmatprep.subr.mxu0 0.0
          %650 = vmatpush2.msra.mxu0 0.0
          %651 = vmatprep.subr.mxu0 0.0
          %652 = vmatpush2.msra.mxu0 0.0
          %653 = vmatprep.subr.mxu0 0.0
          %654 = vmatpush2.msra.mxu0 0.0
          %655 = vmatprep.subr.mxu0 0.0
          %656 = vmatpush2.msra.mxu0 0.0
          %657 = vmatprep.subr.mxu0 0.0
          %658 = vmatpush2.msra.mxu0 0.0
          %659 = vmatprep.subr.mxu0 0.0
          %660 = vmatpush2.msra.mxu0 0.0
          %661 = vmatprep.subr.mxu0 0.0
          %662 = vmatpush2.msra.mxu0 0.0
          %663 = vmatprep.subr.mxu0 0.0
          %664 = vmatpush2.msra.mxu0 0.0
          %665 = vmatprep.subr.mxu0 0.0
          %666 = vmatpush2.msra.mxu0 0.0
          %667 = vmatprep.subr.mxu0 0.0
          %668 = vmatpush2.msra.mxu0 0.0
          %669 = vmatprep.subr.mxu0 0.0
          %670 = vmatpush2.msra.mxu0 0.0
          %671 = vmatprep.subr.mxu0 0.0
          %672 = vmatpush2.msra.mxu0 0.0
          %673 = vmatprep.subr.mxu0 0.0
          %674 = vmatpush2.msra.mxu0 0.0
          %675 = vmatprep.subr.mxu0 0.0
          %676 = vmatpush2.msra.mxu0 0.0
          %677 = vmatprep.subr.mxu0 0.0
          %678 = vmatpush2.msra.mxu0 0.0
          %679 = vmatprep.subr.mxu0 0.0
          %680 = vmatpush2.msra.mxu0 0.0
          %681 = vmatprep.mubr.f32.mxu0 0.0
          %682 = vmatmul.mubr.f32.gmra.mxu0 %v612
          %v683 = vpop.f32.mrf.mxu0
          %v684 = vadd.f32 %v608, %v683
          %v685 = vpop.f32.mrf.mxu0
          %686 = vmatprep.mubr.f32.mxu0 0.0
          %687 = vmatmul.mubr.f32.gmra.mxu0 %v615
          %v688 = vpop.f32.mrf.mxu0
          %v689 = vadd.f32 %v609, %v688
          %v690 = vpop.f32.mrf.mxu0
          %691 = vdwg.mxu0
          %692 = vst.msk [vmem:[#allocation2] sm:$0xff] %vm610, %v684
          %693 = vst.msk [vmem:[#allocation2 + $0x8] sm:$0xff] %vm610, %v689
        $region76: #{tpu_custom_call.1} parent=63 // pred_fallthru
          _
        %v694 = vld [vmem:[#allocation2] sm:$0xff]
        %v695 = vld [vmem:[#allocation2 + $0x8] sm:$0xff]
        %v696 = vld [vmem:[%s570] sm:$0x3f]
        %vm697 = vcmask 261120
        %v698 = vsel %vm697, %v694, 0.0
        %699 = vadd.xlane.f32.xlu0 %v698
        %v700 = vpop.xlane.xlu0 %699
        %v701 = vsel %vm697, %v695, 0.0
        %702 = vadd.xlane.f32.xlu0 %v701
        %v703 = vpop.xlane.xlu0 %702
        %v704 = vrcp.pop 32.0
        %v705 = vmul.f32 %v700, %v704
        %v706 = vmul.f32 %v703, %v704
        %v707 = vsub.f32 %v694, %v705
        %v708 = vsub.f32 %v695, %v706
        %v709 = vmul.f32 %v707, %v707
        %v710 = vmul.f32 %v708, %v708
        %v711 = vsel %vm697, %v709, 0.0
        %712 = vadd.xlane.f32.xlu0 %v711
        %v713 = vpop.xlane.xlu0 %712
        %v714 = vsel %vm697, %v710, 0.0
        %715 = vadd.xlane.f32.xlu0 %v714
        %v716 = vpop.xlane.xlu0 %715
        %v717 = vmul.f32 %v713, %v704
        %v718 = vmul.f32 %v716, %v704
        %v719 = vadd.f32 %v717, 1e-06
        %v720 = vadd.f32 %v718, 1e-06
        %v721 = vrsqrt.pop %v719
        %v722 = vrsqrt.pop %v720
        %v723 = vmul.f32 %v707, %v721
        %v724 = vmul.f32 %v708, %v722
        %v725 = vlaneseq
        %v726 = vshrl.u32 %v725, 7
        %v727 = vsub.s32 0, %v726
        %v728 = vrot.slane %v696, %v727
        %v729 = vmul.f32 %v723, %v728
        %v730 = vmul.f32 %v724, %v728
        %v731 = vlaneseq
        %v732 = vshrl.u32 %v731, 7
        %v733 = vsub.s32 1, %v732
        %v734 = vrot.slane %v696, %v733
        %v735 = vadd.f32 %v729, %v734
        %v736 = vadd.f32 %v730, %v734
        %v737 = vld [vmem:[%s581] sm:$0xff]
        %v738 = vld [vmem:[%s581 + $0x8] sm:$0xff]
        %v739 = vld [vmem:[%s581 + $0x10] sm:$0xff]
        %v740 = vld [vmem:[%s581 + $0x18] sm:$0xff]
        %v741 = vld [vmem:[%s573] sm:$0x1]
        %v743 = vlaneseq
        %v744 = vshrl.u32 %v743, 7
        %v745 = vsub.s32 0, %v744
        %v746 = vrot.slane %v741, %v745
        %v749 = vsel %vm697, %v735, 0
        %v752 = vsel %vm697, %v736, 0
        %754 = vmatprep.subr.mxu0 0.0
        %755 = vmatpush1.msra.mxu0 0.0
        %756 = vmatprep.subr.mxu0 0.0
        %757 = vmatpush1.msra.mxu0 0.0
        %758 = vmatprep.subr.mxu0 0.0
        %759 = vmatpush1.msra.mxu0 0.0
        %760 = vmatprep.subr.mxu0 0.0
        %761 = vmatpush1.msra.mxu0 0.0
        %762 = vmatprep.subr.mxu0 0.0
        %763 = vmatpush1.msra.mxu0 0.0
        %764 = vmatprep.subr.mxu0 0.0
        %765 = vmatpush1.msra.mxu0 0.0
        %766 = vmatprep.subr.mxu0 0.0
        %767 = vmatpush1.msra.mxu0 0.0
        %768 = vmatprep.subr.mxu0 0.0
        %769 = vmatpush1.msra.mxu0 0.0
        %770 = vmatprep.subr.mxu0 0.0
        %771 = vmatpush1.msra.mxu0 0.0
        %772 = vmatprep.subr.mxu0 0.0
        %773 = vmatpush1.msra.mxu0 0.0
        %774 = vmatprep.subr.mxu0 0.0
        %775 = vmatpush1.msra.mxu0 0.0
        %776 = vmatprep.subr.mxu0 0.0
        %777 = vmatpush1.msra.mxu0 0.0
        %778 = vmatprep.subr.mxu0 0.0
        %779 = vmatpush1.msra.mxu0 %v740
        %780 = vmatprep.subr.mxu0 0.0
        %781 = vmatpush1.msra.mxu0 %v739
        %782 = vmatprep.subr.mxu0 0.0
        %783 = vmatpush1.msra.mxu0 %v738
        %784 = vmatprep.subr.mxu0 0.0
        %785 = vmatpush1.msra.mxu0 %v737
        %786 = vmatprep.subr.mxu0 0.0
        %787 = vmatpush2.msra.mxu0 0.0
        %788 = vmatprep.subr.mxu0 0.0
        %789 = vmatpush2.msra.mxu0 0.0
        %790 = vmatprep.subr.mxu0 0.0
        %791 = vmatpush2.msra.mxu0 0.0
        %792 = vmatprep.subr.mxu0 0.0
        %793 = vmatpush2.msra.mxu0 0.0
        %794 = vmatprep.subr.mxu0 0.0
        %795 = vmatpush2.msra.mxu0 0.0
        %796 = vmatprep.subr.mxu0 0.0
        %797 = vmatpush2.msra.mxu0 0.0
        %798 = vmatprep.subr.mxu0 0.0
        %799 = vmatpush2.msra.mxu0 0.0
        %800 = vmatprep.subr.mxu0 0.0
        %801 = vmatpush2.msra.mxu0 0.0
        %802 = vmatprep.subr.mxu0 0.0
        %803 = vmatpush2.msra.mxu0 0.0
        %804 = vmatprep.subr.mxu0 0.0
        %805 = vmatpush2.msra.mxu0 0.0
        %806 = vmatprep.subr.mxu0 0.0
        %807 = vmatpush2.msra.mxu0 0.0
        %808 = vmatprep.subr.mxu0 0.0
        %809 = vmatpush2.msra.mxu0 0.0
        %810 = vmatprep.subr.mxu0 0.0
        %811 = vmatpush2.msra.mxu0 0.0
        %812 = vmatprep.subr.mxu0 0.0
        %813 = vmatpush2.msra.mxu0 0.0
        %814 = vmatprep.subr.mxu0 0.0
        %815 = vmatpush2.msra.mxu0 0.0
        %816 = vmatprep.subr.mxu0 0.0
        %817 = vmatpush2.msra.mxu0 0.0
        %818 = vmatprep.mubr.f32.mxu0 0.0
        %819 = vmatmul.mubr.f32.gmra.mxu0 %v749
        %v820 = vpop.f32.mrf.mxu0
        %v821 = vadd.f32 %v746, %v820
        %v822 = vpop.f32.mrf.mxu0
        %823 = vmatprep.mubr.f32.mxu0 0.0
        %824 = vmatmul.mubr.f32.gmra.mxu0 %v752
        %v825 = vpop.f32.mrf.mxu0
        %v826 = vadd.f32 %v746, %v825
        %v827 = vpop.f32.mrf.mxu0
        %828 = vdwg.mxu0
        %831 = vrot.lane.b32.xlu0 %v821, 96
        %v832 = vpop.permute.xlu0 %831
        %833 = vrot.lane.b32.xlu0 %v826, 96
        %v834 = vpop.permute.xlu0 %833
        %vm835 = vcmask 64512
        %v836 = vsel %vm835, %v821, 0
        %v838 = vsel %vm835, %v826, 0
        %v840 = vsel %vm835, %v832, 0
        %v842 = vsel %vm835, %v834, 0
        %844 = vmatprep.subr.mxu0 0.0
        %845 = vmatpush1.xpose.msra.mxu0 0.0
        %846 = vmatprep.subr.mxu0 0.0
        %847 = vmatpush1.xpose.msra.mxu0 0.0
        %848 = vmatprep.subr.mxu0 0.0
        %849 = vmatpush1.xpose.msra.mxu0 0.0
        %850 = vmatprep.subr.mxu0 0.0
        %851 = vmatpush1.xpose.msra.mxu0 0.0
        %852 = vmatprep.subr.mxu0 0.0
        %853 = vmatpush1.xpose.msra.mxu0 0.0
        %854 = vmatprep.subr.mxu0 0.0
        %855 = vmatpush1.xpose.msra.mxu0 0.0
        %856 = vmatprep.subr.mxu0 0.0
        %857 = vmatpush1.xpose.msra.mxu0 0.0
        %858 = vmatprep.subr.mxu0 0.0
        %859 = vmatpush1.xpose.msra.mxu0 0.0
        %860 = vmatprep.subr.mxu0 0.0
        %861 = vmatpush1.xpose.msra.mxu0 0.0
        %862 = vmatprep.subr.mxu0 0.0
        %863 = vmatpush1.xpose.msra.mxu0 0.0
        %864 = vmatprep.subr.mxu0 0.0
        %865 = vmatpush1.xpose.msra.mxu0 0.0
        %866 = vmatprep.subr.mxu0 0.0
        %867 = vmatpush1.xpose.msra.mxu0 0.0
        %868 = vmatprep.subr.mxu0 0.0
        %869 = vmatpush1.xpose.msra.mxu0 0.0
        %870 = vmatprep.subr.mxu0 0.0
        %871 = vmatpush1.xpose.msra.mxu0 0.0
        %872 = vmatprep.subr.mxu0 0.0
        %873 = vmatpush1.xpose.msra.mxu0 %v842
        %874 = vmatprep.subr.mxu0 0.0
        %875 = vmatpush1.xpose.msra.mxu0 %v840
        %876 = vmatprep.subr.mxu0 0.0
        %877 = vmatpush2.xpose.msra.mxu0 0.0
        %878 = vmatprep.subr.mxu0 0.0
        %879 = vmatpush2.xpose.msra.mxu0 0.0
        %880 = vmatprep.subr.mxu0 0.0
        %881 = vmatpush2.xpose.msra.mxu0 0.0
        %882 = vmatprep.subr.mxu0 0.0
        %883 = vmatpush2.xpose.msra.mxu0 0.0
        %884 = vmatprep.subr.mxu0 0.0
        %885 = vmatpush2.xpose.msra.mxu0 0.0
        %886 = vmatprep.subr.mxu0 0.0
        %887 = vmatpush2.xpose.msra.mxu0 0.0
        %888 = vmatprep.subr.mxu0 0.0
        %889 = vmatpush2.xpose.msra.mxu0 0.0
        %890 = vmatprep.subr.mxu0 0.0
        %891 = vmatpush2.xpose.msra.mxu0 0.0
        %892 = vmatprep.subr.mxu0 0.0
        %893 = vmatpush2.xpose.msra.mxu0 0.0
        %894 = vmatprep.subr.mxu0 0.0
        %895 = vmatpush2.xpose.msra.mxu0 0.0
        %896 = vmatprep.subr.mxu0 0.0
        %897 = vmatpush2.xpose.msra.mxu0 0.0
        %898 = vmatprep.subr.mxu0 0.0
        %899 = vmatpush2.xpose.msra.mxu0 0.0
        %900 = vmatprep.subr.mxu0 0.0
        %901 = vmatpush2.xpose.msra.mxu0 0.0
        %902 = vmatprep.subr.mxu0 0.0
        %903 = vmatpush2.xpose.msra.mxu0 0.0
        %904 = vmatprep.subr.mxu0 0.0
        %905 = vmatpush2.xpose.msra.mxu0 0.0
        %906 = vmatprep.subr.mxu0 0.0
        %907 = vmatpush2.xpose.msra.mxu0 0.0
        %908 = vmatprep.mubr.f32.mxu0 0.0
        %909 = vmatmul.mubr.f32.gmra.mxu0 %v836
        %v910 = vpop.f32.mrf.mxu0
        %v911 = vadd.f32 0.0, %v910
        %v912 = vpop.f32.mrf.mxu0
        %913 = vmatprep.mubr.f32.mxu0 0.0
        %914 = vmatmul.mubr.f32.gmra.mxu0 %v838
        %v915 = vpop.f32.mrf.mxu0
        %v916 = vadd.f32 0.0, %v915
        %v917 = vpop.f32.mrf.mxu0
        %918 = vdwg.mxu0
        %vm919 = vcmask 130048
        %v920 = vsel %vm919, %v911, -inf
        %921 = vmax.xlane.f32.xlu0 %v920
        %v922 = vpop.xlane.xlu0 %921
        %v923 = vsel %vm919, %v916, -inf
        %924 = vmax.xlane.f32.xlu0 %v923
        %v925 = vpop.xlane.xlu0 %924
        %v926 = vsub.f32 %v911, %v922
        %v927 = vsub.f32 %v916, %v925
        %v928 = vmul.f32 %v926, 1.442695
        %v929 = vpow.pop %v928
        %v930 = vmul.f32 %v927, 1.442695
        %v931 = vpow.pop %v930
        %v932 = vsel %vm919, %v929, 0.0
        %933 = vadd.xlane.f32.xlu0 %v932
        %v934 = vpop.xlane.xlu0 %933
        %v935 = vsel %vm919, %v931, 0.0
        %936 = vadd.xlane.f32.xlu0 %v935
        %v937 = vpop.xlane.xlu0 %936
        %v938 = vrcp.pop %v934
        %v939 = vrcp.pop %v937
        %v940 = vmul.f32 %v929, %v938
        %v941 = vmul.f32 %v931, %v939
        %942 = vst.msk [vmem:[%s566] sm:$0xff] %vm919, %v940
        %943 = vst.msk [vmem:[%s566 + $0x8] sm:$0xff] %vm919, %v941
        %944 = vrot.lane.b32.xlu0 %v821, 64
        %v945 = vpop.permute.xlu0 %944
        %946 = vrot.lane.b32.xlu0 %v826, 64
        %v947 = vpop.permute.xlu0 %946
        %v951 = vsel %vm919, %v940, 0
        %v954 = vsel %vm919, %v941, 0
        %956 = vmatprep.subr.mxu0 0.0
        %957 = vmatpush1.msra.mxu0 0.0
        %958 = vmatprep.subr.mxu0 0.0
        %959 = vmatpush1.msra.mxu0 0.0
        %960 = vmatprep.subr.mxu0 0.0
        %961 = vmatpush1.msra.mxu0 0.0
        %962 = vmatprep.subr.mxu0 0.0
        %963 = vmatpush1.msra.mxu0 0.0
        %964 = vmatprep.subr.mxu0 0.0
        %965 = vmatpush1.msra.mxu0 0.0
        %966 = vmatprep.subr.mxu0 0.0
        %967 = vmatpush1.msra.mxu0 0.0
        %968 = vmatprep.subr.mxu0 0.0
        %969 = vmatpush1.msra.mxu0 0.0
        %970 = vmatprep.subr.mxu0 0.0
        %971 = vmatpush1.msra.mxu0 0.0
        %972 = vmatprep.subr.mxu0 0.0
        %973 = vmatpush1.msra.mxu0 0.0
        %974 = vmatprep.subr.mxu0 0.0
        %975 = vmatpush1.msra.mxu0 0.0
        %976 = vmatprep.subr.mxu0 0.0
        %977 = vmatpush1.msra.mxu0 0.0
        %978 = vmatprep.subr.mxu0 0.0
        %979 = vmatpush1.msra.mxu0 0.0
        %980 = vmatprep.subr.mxu0 0.0
        %981 = vmatpush1.msra.mxu0 0.0
        %982 = vmatprep.subr.mxu0 0.0
        %983 = vmatpush1.msra.mxu0 0.0
        %984 = vmatprep.subr.mxu0 0.0
        %985 = vmatpush1.msra.mxu0 %v947
        %986 = vmatprep.subr.mxu0 0.0
        %987 = vmatpush1.msra.mxu0 %v945
        %988 = vmatprep.subr.mxu0 0.0
        %989 = vmatpush2.msra.mxu0 0.0
        %990 = vmatprep.subr.mxu0 0.0
        %991 = vmatpush2.msra.mxu0 0.0
        %992 = vmatprep.subr.mxu0 0.0
        %993 = vmatpush2.msra.mxu0 0.0
        %994 = vmatprep.subr.mxu0 0.0
        %995 = vmatpush2.msra.mxu0 0.0
        %996 = vmatprep.subr.mxu0 0.0
        %997 = vmatpush2.msra.mxu0 0.0
        %998 = vmatprep.subr.mxu0 0.0
        %999 = vmatpush2.msra.mxu0 0.0
        %1000 = vmatprep.subr.mxu0 0.0
        %1001 = vmatpush2.msra.mxu0 0.0
        %1002 = vmatprep.subr.mxu0 0.0
        %1003 = vmatpush2.msra.mxu0 0.0
        %1004 = vmatprep.subr.mxu0 0.0
        %1005 = vmatpush2.msra.mxu0 0.0
        %1006 = vmatprep.subr.mxu0 0.0
        %1007 = vmatpush2.msra.mxu0 0.0
        %1008 = vmatprep.subr.mxu0 0.0
        %1009 = vmatpush2.msra.mxu0 0.0
        %1010 = vmatprep.subr.mxu0 0.0
        %1011 = vmatpush2.msra.mxu0 0.0
        %1012 = vmatprep.subr.mxu0 0.0
        %1013 = vmatpush2.msra.mxu0 0.0
        %1014 = vmatprep.subr.mxu0 0.0
        %1015 = vmatpush2.msra.mxu0 0.0
        %1016 = vmatprep.subr.mxu0 0.0
        %1017 = vmatpush2.msra.mxu0 0.0
        %1018 = vmatprep.subr.mxu0 0.0
        %1019 = vmatpush2.msra.mxu0 0.0
        %1020 = vmatprep.mubr.f32.mxu0 0.0
        %1021 = vmatmul.mubr.f32.gmra.mxu0 %v951
        %v1022 = vpop.f32.mrf.mxu0
        %v1023 = vadd.f32 0.0, %v1022
        %v1024 = vpop.f32.mrf.mxu0
        %1025 = vmatprep.mubr.f32.mxu0 0.0
        %1026 = vmatmul.mubr.f32.gmra.mxu0 %v954
        %v1027 = vpop.f32.mrf.mxu0
        %v1028 = vadd.f32 0.0, %v1027
        %v1029 = vpop.f32.mrf.mxu0
        %1030 = vdwg.mxu0
        %1031 = vst.msk [vmem:[#allocation3] sm:$0xff] %vm835, %v1023
        %1032 = vst.msk [vmem:[#allocation3 + $0x8] sm:$0xff] %vm835, %v1028
        %1033 = vrot.lane.b32.xlu0 %v821, 120
        %v1034 = vpop.permute.xlu0 %1033
        %1035 = vrot.lane.b32.xlu0 %v826, 120
        %v1036 = vpop.permute.xlu0 %1035
        %1037 = vrot.lane.b32.xlu0 %v821, 88
        %v1038 = vpop.permute.xlu0 %1037
        %1039 = vrot.lane.b32.xlu0 %v826, 88
        %v1040 = vpop.permute.xlu0 %1039
        %v1041 = vsel %vm835, %v1034, 0
        %v1043 = vsel %vm835, %v1036, 0
        %v1045 = vsel %vm835, %v1038, 0
        %v1047 = vsel %vm835, %v1040, 0
        %1049 = vmatprep.subr.mxu0 0.0
        %1050 = vmatpush1.xpose.msra.mxu0 0.0
        %1051 = vmatprep.subr.mxu0 0.0
        %1052 = vmatpush1.xpose.msra.mxu0 0.0
        %1053 = vmatprep.subr.mxu0 0.0
        %1054 = vmatpush1.xpose.msra.mxu0 0.0
        %1055 = vmatprep.subr.mxu0 0.0
        %1056 = vmatpush1.xpose.msra.mxu0 0.0
        %1057 = vmatprep.subr.mxu0 0.0
        %1058 = vmatpush1.xpose.msra.mxu0 0.0
        %1059 = vmatprep.subr.mxu0 0.0
        %1060 = vmatpush1.xpose.msra.mxu0 0.0
        %1061 = vmatprep.subr.mxu0 0.0
        %1062 = vmatpush1.xpose.msra.mxu0 0.0
        %1063 = vmatprep.subr.mxu0 0.0
        %1064 = vmatpush1.xpose.msra.mxu0 0.0
        %1065 = vmatprep.subr.mxu0 0.0
        %1066 = vmatpush1.xpose.msra.mxu0 0.0
        %1067 = vmatprep.subr.mxu0 0.0
        %1068 = vmatpush1.xpose.msra.mxu0 0.0
        %1069 = vmatprep.subr.mxu0 0.0
        %1070 = vmatpush1.xpose.msra.mxu0 0.0
        %1071 = vmatprep.subr.mxu0 0.0
        %1072 = vmatpush1.xpose.msra.mxu0 0.0
        %1073 = vmatprep.subr.mxu0 0.0
        %1074 = vmatpush1.xpose.msra.mxu0 0.0
        %1075 = vmatprep.subr.mxu0 0.0
        %1076 = vmatpush1.xpose.msra.mxu0 0.0
        %1077 = vmatprep.subr.mxu0 0.0
        %1078 = vmatpush1.xpose.msra.mxu0 %v1047
        %1079 = vmatprep.subr.mxu0 0.0
        %1080 = vmatpush1.xpose.msra.mxu0 %v1045
        %1081 = vmatprep.subr.mxu0 0.0
        %1082 = vmatpush2.xpose.msra.mxu0 0.0
        %1083 = vmatprep.subr.mxu0 0.0
        %1084 = vmatpush2.xpose.msra.mxu0 0.0
        %1085 = vmatprep.subr.mxu0 0.0
        %1086 = vmatpush2.xpose.msra.mxu0 0.0
        %1087 = vmatprep.subr.mxu0 0.0
        %1088 = vmatpush2.xpose.msra.mxu0 0.0
        %1089 = vmatprep.subr.mxu0 0.0
        %1090 = vmatpush2.xpose.msra.mxu0 0.0
        %1091 = vmatprep.subr.mxu0 0.0
        %1092 = vmatpush2.xpose.msra.mxu0 0.0
        %1093 = vmatprep.subr.mxu0 0.0
        %1094 = vmatpush2.xpose.msra.mxu0 0.0
        %1095 = vmatprep.subr.mxu0 0.0
        %1096 = vmatpush2.xpose.msra.mxu0 0.0
        %1097 = vmatprep.subr.mxu0 0.0
        %1098 = vmatpush2.xpose.msra.mxu0 0.0
        %1099 = vmatprep.subr.mxu0 0.0
        %1100 = vmatpush2.xpose.msra.mxu0 0.0
        %1101 = vmatprep.subr.mxu0 0.0
        %1102 = vmatpush2.xpose.msra.mxu0 0.0
        %1103 = vmatprep.subr.mxu0 0.0
        %1104 = vmatpush2.xpose.msra.mxu0 0.0
        %1105 = vmatprep.subr.mxu0 0.0
        %1106 = vmatpush2.xpose.msra.mxu0 0.0
        %1107 = vmatprep.subr.mxu0 0.0
        %1108 = vmatpush2.xpose.msra.mxu0 0.0
        %1109 = vmatprep.subr.mxu0 0.0
        %1110 = vmatpush2.xpose.msra.mxu0 0.0
        %1111 = vmatprep.subr.mxu0 0.0
        %1112 = vmatpush2.xpose.msra.mxu0 0.0
        %1113 = vmatprep.mubr.f32.mxu0 0.0
        %1114 = vmatmul.mubr.f32.gmra.mxu0 %v1041
        %v1115 = vpop.f32.mrf.mxu0
        %v1116 = vadd.f32 0.0, %v1115
        %v1117 = vpop.f32.mrf.mxu0
        %1118 = vmatprep.mubr.f32.mxu0 0.0
        %1119 = vmatmul.mubr.f32.gmra.mxu0 %v1043
        %v1120 = vpop.f32.mrf.mxu0
        %v1121 = vadd.f32 0.0, %v1120
        %v1122 = vpop.f32.mrf.mxu0
        %1123 = vdwg.mxu0
        %v1124 = vsel %vm919, %v1116, -inf
        %1125 = vmax.xlane.f32.xlu0 %v1124
        %v1126 = vpop.xlane.xlu0 %1125
        %v1127 = vsel %vm919, %v1121, -inf
        %1128 = vmax.xlane.f32.xlu0 %v1127
        %v1129 = vpop.xlane.xlu0 %1128
        %v1130 = vsub.f32 %v1116, %v1126
        %v1131 = vsub.f32 %v1121, %v1129
        %v1132 = vmul.f32 %v1130, 1.442695
        %v1133 = vpow.pop %v1132
        %v1134 = vmul.f32 %v1131, 1.442695
        %v1135 = vpow.pop %v1134
        %v1136 = vsel %vm919, %v1133, 0.0
        %1137 = vadd.xlane.f32.xlu0 %v1136
        %v1138 = vpop.xlane.xlu0 %1137
        %v1139 = vsel %vm919, %v1135, 0.0
        %1140 = vadd.xlane.f32.xlu0 %v1139
        %v1141 = vpop.xlane.xlu0 %1140
        %v1142 = vrcp.pop %v1138
        %v1143 = vrcp.pop %v1141
        %v1144 = vmul.f32 %v1133, %v1142
        %v1145 = vmul.f32 %v1135, %v1143
        %s1146 = scalar_lea.vmem %s566, 16 [#allocation10]
        %1147 = vst.msk [vmem:[%s1146] sm:$0xff] %vm919, %v1144
        %1148 = vst.msk [vmem:[%s1146 + $0x8] sm:$0xff] %vm919, %v1145
        %1149 = vrot.lane.b32.xlu0 %v821, 56
        %v1150 = vpop.permute.xlu0 %1149
        %1151 = vrot.lane.b32.xlu0 %v826, 56
        %v1152 = vpop.permute.xlu0 %1151
        %v1156 = vsel %vm919, %v1144, 0
        %v1159 = vsel %vm919, %v1145, 0
        %1161 = vmatprep.subr.mxu0 0.0
        %1162 = vmatpush1.msra.mxu0 0.0
        %1163 = vmatprep.subr.mxu0 0.0
        %1164 = vmatpush1.msra.mxu0 0.0
        %1165 = vmatprep.subr.mxu0 0.0
        %1166 = vmatpush1.msra.mxu0 0.0
        %1167 = vmatprep.subr.mxu0 0.0
        %1168 = vmatpush1.msra.mxu0 0.0
        %1169 = vmatprep.subr.mxu0 0.0
        %1170 = vmatpush1.msra.mxu0 0.0
        %1171 = vmatprep.subr.mxu0 0.0
        %1172 = vmatpush1.msra.mxu0 0.0
        %1173 = vmatprep.subr.mxu0 0.0
        %1174 = vmatpush1.msra.mxu0 0.0
        %1175 = vmatprep.subr.mxu0 0.0
        %1176 = vmatpush1.msra.mxu0 0.0
        %1177 = vmatprep.subr.mxu0 0.0
        %1178 = vmatpush1.msra.mxu0 0.0
        %1179 = vmatprep.subr.mxu0 0.0
        %1180 = vmatpush1.msra.mxu0 0.0
        %1181 = vmatprep.subr.mxu0 0.0
        %1182 = vmatpush1.msra.mxu0 0.0
        %1183 = vmatprep.subr.mxu0 0.0
        %1184 = vmatpush1.msra.mxu0 0.0
        %1185 = vmatprep.subr.mxu0 0.0
        %1186 = vmatpush1.msra.mxu0 0.0
        %1187 = vmatprep.subr.mxu0 0.0
        %1188 = vmatpush1.msra.mxu0 0.0
        %1189 = vmatprep.subr.mxu0 0.0
        %1190 = vmatpush1.msra.mxu0 %v1152
        %1191 = vmatprep.subr.mxu0 0.0
        %1192 = vmatpush1.msra.mxu0 %v1150
        %1193 = vmatprep.subr.mxu0 0.0
        %1194 = vmatpush2.msra.mxu0 0.0
        %1195 = vmatprep.subr.mxu0 0.0
        %1196 = vmatpush2.msra.mxu0 0.0
        %1197 = vmatprep.subr.mxu0 0.0
        %1198 = vmatpush2.msra.mxu0 0.0
        %1199 = vmatprep.subr.mxu0 0.0
        %1200 = vmatpush2.msra.mxu0 0.0
        %1201 = vmatprep.subr.mxu0 0.0
        %1202 = vmatpush2.msra.mxu0 0.0
        %1203 = vmatprep.subr.mxu0 0.0
        %1204 = vmatpush2.msra.mxu0 0.0
        %1205 = vmatprep.subr.mxu0 0.0
        %1206 = vmatpush2.msra.mxu0 0.0
        %1207 = vmatprep.subr.mxu0 0.0
        %1208 = vmatpush2.msra.mxu0 0.0
        %1209 = vmatprep.subr.mxu0 0.0
        %1210 = vmatpush2.msra.mxu0 0.0
        %1211 = vmatprep.subr.mxu0 0.0
        %1212 = vmatpush2.msra.mxu0 0.0
        %1213 = vmatprep.subr.mxu0 0.0
        %1214 = vmatpush2.msra.mxu0 0.0
        %1215 = vmatprep.subr.mxu0 0.0
        %1216 = vmatpush2.msra.mxu0 0.0
        %1217 = vmatprep.subr.mxu0 0.0
        %1218 = vmatpush2.msra.mxu0 0.0
        %1219 = vmatprep.subr.mxu0 0.0
        %1220 = vmatpush2.msra.mxu0 0.0
        %1221 = vmatprep.subr.mxu0 0.0
        %1222 = vmatpush2.msra.mxu0 0.0
        %1223 = vmatprep.subr.mxu0 0.0
        %1224 = vmatpush2.msra.mxu0 0.0
        %1225 = vmatprep.mubr.f32.mxu0 0.0
        %1226 = vmatmul.mubr.f32.gmra.mxu0 %v1156
        %v1227 = vpop.f32.mrf.mxu0
        %v1228 = vadd.f32 0.0, %v1227
        %v1229 = vpop.f32.mrf.mxu0
        %1230 = vmatprep.mubr.f32.mxu0 0.0
        %1231 = vmatmul.mubr.f32.gmra.mxu0 %v1159
        %v1232 = vpop.f32.mrf.mxu0
        %v1233 = vadd.f32 0.0, %v1232
        %v1234 = vpop.f32.mrf.mxu0
        %1235 = vdwg.mxu0
        %1238 = vrot.lane.b32.xlu0 %v1228, 8
        %v1239 = vpop.permute.xlu0 %1238
        %1240 = vrot.lane.b32.xlu0 %v1233, 8
        %v1241 = vpop.permute.xlu0 %1240
        %vm1244 = vcmask 130112
        %1245 = vst.msk [vmem:[#allocation3] sm:$0xff] %vm1244, %v1239
        %1246 = vst.msk [vmem:[#allocation3 + $0x8] sm:$0xff] %vm1244, %v1241
        %1247 = vrot.lane.b32.xlu0 %v821, 112
        %v1248 = vpop.permute.xlu0 %1247
        %1249 = vrot.lane.b32.xlu0 %v826, 112
        %v1250 = vpop.permute.xlu0 %1249
        %1251 = vrot.lane.b32.xlu0 %v821, 80
        %v1252 = vpop.permute.xlu0 %1251
        %1253 = vrot.lane.b32.xlu0 %v826, 80
        %v1254 = vpop.permute.xlu0 %1253
        %v1255 = vsel %vm835, %v1248, 0
        %v1257 = vsel %vm835, %v1250, 0
        %v1259 = vsel %vm835, %v1252, 0
        %v1261 = vsel %vm835, %v1254, 0
        %1263 = vmatprep.subr.mxu0 0.0
        %1264 = vmatpush1.xpose.msra.mxu0 0.0
        %1265 = vmatprep.subr.mxu0 0.0
        %1266 = vmatpush1.xpose.msra.mxu0 0.0
        %1267 = vmatprep.subr.mxu0 0.0
        %1268 = vmatpush1.xpose.msra.mxu0 0.0
        %1269 = vmatprep.subr.mxu0 0.0
        %1270 = vmatpush1.xpose.msra.mxu0 0.0
        %1271 = vmatprep.subr.mxu0 0.0
        %1272 = vmatpush1.xpose.msra.mxu0 0.0
        %1273 = vmatprep.subr.mxu0 0.0
        %1274 = vmatpush1.xpose.msra.mxu0 0.0
        %1275 = vmatprep.subr.mxu0 0.0
        %1276 = vmatpush1.xpose.msra.mxu0 0.0
        %1277 = vmatprep.subr.mxu0 0.0
        %1278 = vmatpush1.xpose.msra.mxu0 0.0
        %1279 = vmatprep.subr.mxu0 0.0
        %1280 = vmatpush1.xpose.msra.mxu0 0.0
        %1281 = vmatprep.subr.mxu0 0.0
        %1282 = vmatpush1.xpose.msra.mxu0 0.0
        %1283 = vmatprep.subr.mxu0 0.0
        %1284 = vmatpush1.xpose.msra.mxu0 0.0
        %1285 = vmatprep.subr.mxu0 0.0
        %1286 = vmatpush1.xpose.msra.mxu0 0.0
        %1287 = vmatprep.subr.mxu0 0.0
        %1288 = vmatpush1.xpose.msra.mxu0 0.0
        %1289 = vmatprep.subr.mxu0 0.0
        %1290 = vmatpush1.xpose.msra.mxu0 0.0
        %1291 = vmatprep.subr.mxu0 0.0
        %1292 = vmatpush1.xpose.msra.mxu0 %v1261
        %1293 = vmatprep.subr.mxu0 0.0
        %1294 = vmatpush1.xpose.msra.mxu0 %v1259
        %1295 = vmatprep.subr.mxu0 0.0
        %1296 = vmatpush2.xpose.msra.mxu0 0.0
        %1297 = vmatprep.subr.mxu0 0.0
        %1298 = vmatpush2.xpose.msra.mxu0 0.0
        %1299 = vmatprep.subr.mxu0 0.0
        %1300 = vmatpush2.xpose.msra.mxu0 0.0
        %1301 = vmatprep.subr.mxu0 0.0
        %1302 = vmatpush2.xpose.msra.mxu0 0.0
        %1303 = vmatprep.subr.mxu0 0.0
        %1304 = vmatpush2.xpose.msra.mxu0 0.0
        %1305 = vmatprep.subr.mxu0 0.0
        %1306 = vmatpush2.xpose.msra.mxu0 0.0
        %1307 = vmatprep.subr.mxu0 0.0
        %1308 = vmatpush2.xpose.msra.mxu0 0.0
        %1309 = vmatprep.subr.mxu0 0.0
        %1310 = vmatpush2.xpose.msra.mxu0 0.0
        %1311 = vmatprep.subr.mxu0 0.0
        %1312 = vmatpush2.xpose.msra.mxu0 0.0
        %1313 = vmatprep.subr.mxu0 0.0
        %1314 = vmatpush2.xpose.msra.mxu0 0.0
        %1315 = vmatprep.subr.mxu0 0.0
        %1316 = vmatpush2.xpose.msra.mxu0 0.0
        %1317 = vmatprep.subr.mxu0 0.0
        %1318 = vmatpush2.xpose.msra.mxu0 0.0
        %1319 = vmatprep.subr.mxu0 0.0
        %1320 = vmatpush2.xpose.msra.mxu0 0.0
        %1321 = vmatprep.subr.mxu0 0.0
        %1322 = vmatpush2.xpose.msra.mxu0 0.0
        %1323 = vmatprep.subr.mxu0 0.0
        %1324 = vmatpush2.xpose.msra.mxu0 0.0
        %1325 = vmatprep.subr.mxu0 0.0
        %1326 = vmatpush2.xpose.msra.mxu0 0.0
        %1327 = vmatprep.mubr.f32.mxu0 0.0
        %1328 = vmatmul.mubr.f32.gmra.mxu0 %v1255
        %v1329 = vpop.f32.mrf.mxu0
        %v1330 = vadd.f32 0.0, %v1329
        %v1331 = vpop.f32.mrf.mxu0
        %1332 = vmatprep.mubr.f32.mxu0 0.0
        %1333 = vmatmul.mubr.f32.gmra.mxu0 %v1257
        %v1334 = vpop.f32.mrf.mxu0
        %v1335 = vadd.f32 0.0, %v1334
        %v1336 = vpop.f32.mrf.mxu0
        %1337 = vdwg.mxu0
        %v1338 = vsel %vm919, %v1330, -inf
        %1339 = vmax.xlane.f32.xlu0 %v1338
        %v1340 = vpop.xlane.xlu0 %1339
        %v1341 = vsel %vm919, %v1335, -inf
        %1342 = vmax.xlane.f32.xlu0 %v1341
        %v1343 = vpop.xlane.xlu0 %1342
        %v1344 = vsub.f32 %v1330, %v1340
        %v1345 = vsub.f32 %v1335, %v1343
        %v1346 = vmul.f32 %v1344, 1.442695
        %v1347 = vpow.pop %v1346
        %v1348 = vmul.f32 %v1345, 1.442695
        %v1349 = vpow.pop %v1348
        %v1350 = vsel %vm919, %v1347, 0.0
        %1351 = vadd.xlane.f32.xlu0 %v1350
        %v1352 = vpop.xlane.xlu0 %1351
        %v1353 = vsel %vm919, %v1349, 0.0
        %1354 = vadd.xlane.f32.xlu0 %v1353
        %v1355 = vpop.xlane.xlu0 %1354
        %v1356 = vrcp.pop %v1352
        %v1357 = vrcp.pop %v1355
        %v1358 = vmul.f32 %v1347, %v1356
        %v1359 = vmul.f32 %v1349, %v1357
        %s1360 = scalar_lea.vmem %s566, 32 [#allocation10]
        %1361 = vst.msk [vmem:[%s1360] sm:$0xff] %vm919, %v1358
        %1362 = vst.msk [vmem:[%s1360 + $0x8] sm:$0xff] %vm919, %v1359
        %1363 = vrot.lane.b32.xlu0 %v821, 48
        %v1364 = vpop.permute.xlu0 %1363
        %1365 = vrot.lane.b32.xlu0 %v826, 48
        %v1366 = vpop.permute.xlu0 %1365
        %v1370 = vsel %vm919, %v1358, 0
        %v1373 = vsel %vm919, %v1359, 0
        %1375 = vmatprep.subr.mxu0 0.0
        %1376 = vmatpush1.msra.mxu0 0.0
        %1377 = vmatprep.subr.mxu0 0.0
        %1378 = vmatpush1.msra.mxu0 0.0
        %1379 = vmatprep.subr.mxu0 0.0
        %1380 = vmatpush1.msra.mxu0 0.0
        %1381 = vmatprep.subr.mxu0 0.0
        %1382 = vmatpush1.msra.mxu0 0.0
        %1383 = vmatprep.subr.mxu0 0.0
        %1384 = vmatpush1.msra.mxu0 0.0
        %1385 = vmatprep.subr.mxu0 0.0
        %1386 = vmatpush1.msra.mxu0 0.0
        %1387 = vmatprep.subr.mxu0 0.0
        %1388 = vmatpush1.msra.mxu0 0.0
        %1389 = vmatprep.subr.mxu0 0.0
        %1390 = vmatpush1.msra.mxu0 0.0
        %1391 = vmatprep.subr.mxu0 0.0
        %1392 = vmatpush1.msra.mxu0 0.0
        %1393 = vmatprep.subr.mxu0 0.0
        %1394 = vmatpush1.msra.mxu0 0.0
        %1395 = vmatprep.subr.mxu0 0.0
        %1396 = vmatpush1.msra.mxu0 0.0
        %1397 = vmatprep.subr.mxu0 0.0
        %1398 = vmatpush1.msra.mxu0 0.0
        %1399 = vmatprep.subr.mxu0 0.0
        %1400 = vmatpush1.msra.mxu0 0.0
        %1401 = vmatprep.subr.mxu0 0.0
        %1402 = vmatpush1.msra.mxu0 0.0
        %1403 = vmatprep.subr.mxu0 0.0
        %1404 = vmatpush1.msra.mxu0 %v1366
        %1405 = vmatprep.subr.mxu0 0.0
        %1406 = vmatpush1.msra.mxu0 %v1364
        %1407 = vmatprep.subr.mxu0 0.0
        %1408 = vmatpush2.msra.mxu0 0.0
        %1409 = vmatprep.subr.mxu0 0.0
        %1410 = vmatpush2.msra.mxu0 0.0
        %1411 = vmatprep.subr.mxu0 0.0
        %1412 = vmatpush2.msra.mxu0 0.0
        %1413 = vmatprep.subr.mxu0 0.0
        %1414 = vmatpush2.msra.mxu0 0.0
        %1415 = vmatprep.subr.mxu0 0.0
        %1416 = vmatpush2.msra.mxu0 0.0
        %1417 = vmatprep.subr.mxu0 0.0
        %1418 = vmatpush2.msra.mxu0 0.0
        %1419 = vmatprep.subr.mxu0 0.0
        %1420 = vmatpush2.msra.mxu0 0.0
        %1421 = vmatprep.subr.mxu0 0.0
        %1422 = vmatpush2.msra.mxu0 0.0
        %1423 = vmatprep.subr.mxu0 0.0
        %1424 = vmatpush2.msra.mxu0 0.0
        %1425 = vmatprep.subr.mxu0 0.0
        %1426 = vmatpush2.msra.mxu0 0.0
        %1427 = vmatprep.subr.mxu0 0.0
        %1428 = vmatpush2.msra.mxu0 0.0
        %1429 = vmatprep.subr.mxu0 0.0
        %1430 = vmatpush2.msra.mxu0 0.0
        %1431 = vmatprep.subr.mxu0 0.0
        %1432 = vmatpush2.msra.mxu0 0.0
        %1433 = vmatprep.subr.mxu0 0.0
        %1434 = vmatpush2.msra.mxu0 0.0
        %1435 = vmatprep.subr.mxu0 0.0
        %1436 = vmatpush2.msra.mxu0 0.0
        %1437 = vmatprep.subr.mxu0 0.0
        %1438 = vmatpush2.msra.mxu0 0.0
        %1439 = vmatprep.mubr.f32.mxu0 0.0
        %1440 = vmatmul.mubr.f32.gmra.mxu0 %v1370
        %v1441 = vpop.f32.mrf.mxu0
        %v1442 = vadd.f32 0.0, %v1441
        %v1443 = vpop.f32.mrf.mxu0
        %1444 = vmatprep.mubr.f32.mxu0 0.0
        %1445 = vmatmul.mubr.f32.gmra.mxu0 %v1373
        %v1446 = vpop.f32.mrf.mxu0
        %v1447 = vadd.f32 0.0, %v1446
        %v1448 = vpop.f32.mrf.mxu0
        %1449 = vdwg.mxu0
        %1452 = vrot.lane.b32.xlu0 %v1442, 16
        %v1453 = vpop.permute.xlu0 %1452
        %1454 = vrot.lane.b32.xlu0 %v1447, 16
        %v1455 = vpop.permute.xlu0 %1454
        %vm1458 = vcmask 195712
        %1459 = vst.msk [vmem:[#allocation3] sm:$0xff] %vm1458, %v1453
        %1460 = vst.msk [vmem:[#allocation3 + $0x8] sm:$0xff] %vm1458, %v1455
        %1461 = vrot.lane.b32.xlu0 %v821, 104
        %v1462 = vpop.permute.xlu0 %1461
        %1463 = vrot.lane.b32.xlu0 %v826, 104
        %v1464 = vpop.permute.xlu0 %1463
        %1465 = vrot.lane.b32.xlu0 %v821, 72
        %v1466 = vpop.permute.xlu0 %1465
        %1467 = vrot.lane.b32.xlu0 %v826, 72
        %v1468 = vpop.permute.xlu0 %1467
        %v1469 = vsel %vm835, %v1462, 0
        %v1471 = vsel %vm835, %v1464, 0
        %v1473 = vsel %vm835, %v1466, 0
        %v1475 = vsel %vm835, %v1468, 0
        %1477 = vmatprep.subr.mxu0 0.0
        %1478 = vmatpush1.xpose.msra.mxu0 0.0
        %1479 = vmatprep.subr.mxu0 0.0
        %1480 = vmatpush1.xpose.msra.mxu0 0.0
        %1481 = vmatprep.subr.mxu0 0.0
        %1482 = vmatpush1.xpose.msra.mxu0 0.0
        %1483 = vmatprep.subr.mxu0 0.0
        %1484 = vmatpush1.xpose.msra.mxu0 0.0
        %1485 = vmatprep.subr.mxu0 0.0
        %1486 = vmatpush1.xpose.msra.mxu0 0.0
        %1487 = vmatprep.subr.mxu0 0.0
        %1488 = vmatpush1.xpose.msra.mxu0 0.0
        %1489 = vmatprep.subr.mxu0 0.0
        %1490 = vmatpush1.xpose.msra.mxu0 0.0
        %1491 = vmatprep.subr.mxu0 0.0
        %1492 = vmatpush1.xpose.msra.mxu0 0.0
        %1493 = vmatprep.subr.mxu0 0.0
        %1494 = vmatpush1.xpose.msra.mxu0 0.0
        %1495 = vmatprep.subr.mxu0 0.0
        %1496 = vmatpush1.xpose.msra.mxu0 0.0
        %1497 = vmatprep.subr.mxu0 0.0
        %1498 = vmatpush1.xpose.msra.mxu0 0.0
        %1499 = vmatprep.subr.mxu0 0.0
        %1500 = vmatpush1.xpose.msra.mxu0 0.0
        %1501 = vmatprep.subr.mxu0 0.0
        %1502 = vmatpush1.xpose.msra.mxu0 0.0
        %1503 = vmatprep.subr.mxu0 0.0
        %1504 = vmatpush1.xpose.msra.mxu0 0.0
        %1505 = vmatprep.subr.mxu0 0.0
        %1506 = vmatpush1.xpose.msra.mxu0 %v1475
        %1507 = vmatprep.subr.mxu0 0.0
        %1508 = vmatpush1.xpose.msra.mxu0 %v1473
        %1509 = vmatprep.subr.mxu0 0.0
        %1510 = vmatpush2.xpose.msra.mxu0 0.0
        %1511 = vmatprep.subr.mxu0 0.0
        %1512 = vmatpush2.xpose.msra.mxu0 0.0
        %1513 = vmatprep.subr.mxu0 0.0
        %1514 = vmatpush2.xpose.msra.mxu0 0.0
        %1515 = vmatprep.subr.mxu0 0.0
        %1516 = vmatpush2.xpose.msra.mxu0 0.0
        %1517 = vmatprep.subr.mxu0 0.0
        %1518 = vmatpush2.xpose.msra.mxu0 0.0
        %1519 = vmatprep.subr.mxu0 0.0
        %1520 = vmatpush2.xpose.msra.mxu0 0.0
        %1521 = vmatprep.subr.mxu0 0.0
        %1522 = vmatpush2.xpose.msra.mxu0 0.0
        %1523 = vmatprep.subr.mxu0 0.0
        %1524 = vmatpush2.xpose.msra.mxu0 0.0
        %1525 = vmatprep.subr.mxu0 0.0
        %1526 = vmatpush2.xpose.msra.mxu0 0.0
        %1527 = vmatprep.subr.mxu0 0.0
        %1528 = vmatpush2.xpose.msra.mxu0 0.0
        %1529 = vmatprep.subr.mxu0 0.0
        %1530 = vmatpush2.xpose.msra.mxu0 0.0
        %1531 = vmatprep.subr.mxu0 0.0
        %1532 = vmatpush2.xpose.msra.mxu0 0.0
        %1533 = vmatprep.subr.mxu0 0.0
        %1534 = vmatpush2.xpose.msra.mxu0 0.0
        %1535 = vmatprep.subr.mxu0 0.0
        %1536 = vmatpush2.xpose.msra.mxu0 0.0
        %1537 = vmatprep.subr.mxu0 0.0
        %1538 = vmatpush2.xpose.msra.mxu0 0.0
        %1539 = vmatprep.subr.mxu0 0.0
        %1540 = vmatpush2.xpose.msra.mxu0 0.0
        %1541 = vmatprep.mubr.f32.mxu0 0.0
        %1542 = vmatmul.mubr.f32.gmra.mxu0 %v1469
        %v1543 = vpop.f32.mrf.mxu0
        %v1544 = vadd.f32 0.0, %v1543
        %v1545 = vpop.f32.mrf.mxu0
        %1546 = vmatprep.mubr.f32.mxu0 0.0
        %1547 = vmatmul.mubr.f32.gmra.mxu0 %v1471
        %v1548 = vpop.f32.mrf.mxu0
        %v1549 = vadd.f32 0.0, %v1548
        %v1550 = vpop.f32.mrf.mxu0
        %1551 = vdwg.mxu0
        %v1552 = vsel %vm919, %v1544, -inf
        %1553 = vmax.xlane.f32.xlu0 %v1552
        %v1554 = vpop.xlane.xlu0 %1553
        %v1555 = vsel %vm919, %v1549, -inf
        %1556 = vmax.xlane.f32.xlu0 %v1555
        %v1557 = vpop.xlane.xlu0 %1556
        %v1558 = vsub.f32 %v1544, %v1554
        %v1559 = vsub.f32 %v1549, %v1557
        %v1560 = vmul.f32 %v1558, 1.442695
        %v1561 = vpow.pop %v1560
        %v1562 = vmul.f32 %v1559, 1.442695
        %v1563 = vpow.pop %v1562
        %v1564 = vsel %vm919, %v1561, 0.0
        %1565 = vadd.xlane.f32.xlu0 %v1564
        %v1566 = vpop.xlane.xlu0 %1565
        %v1567 = vsel %vm919, %v1563, 0.0
        %1568 = vadd.xlane.f32.xlu0 %v1567
        %v1569 = vpop.xlane.xlu0 %1568
        %v1570 = vrcp.pop %v1566
        %v1571 = vrcp.pop %v1569
        %v1572 = vmul.f32 %v1561, %v1570
        %v1573 = vmul.f32 %v1563, %v1571
        %s1574 = scalar_lea.vmem %s566, 48 [#allocation10]
        %1575 = vst.msk [vmem:[%s1574] sm:$0xff] %vm919, %v1572
        %1576 = vst.msk [vmem:[%s1574 + $0x8] sm:$0xff] %vm919, %v1573
        %1577 = vrot.lane.b32.xlu0 %v821, 40
        %v1578 = vpop.permute.xlu0 %1577
        %1579 = vrot.lane.b32.xlu0 %v826, 40
        %v1580 = vpop.permute.xlu0 %1579
        %v1584 = vsel %vm919, %v1572, 0
        %v1587 = vsel %vm919, %v1573, 0
        %1589 = vmatprep.subr.mxu0 0.0
        %1590 = vmatpush1.msra.mxu0 0.0
        %1591 = vmatprep.subr.mxu0 0.0
        %1592 = vmatpush1.msra.mxu0 0.0
        %1593 = vmatprep.subr.mxu0 0.0
        %1594 = vmatpush1.msra.mxu0 0.0
        %1595 = vmatprep.subr.mxu0 0.0
        %1596 = vmatpush1.msra.mxu0 0.0
        %1597 = vmatprep.subr.mxu0 0.0
        %1598 = vmatpush1.msra.mxu0 0.0
        %1599 = vmatprep.subr.mxu0 0.0
        %1600 = vmatpush1.msra.mxu0 0.0
        %1601 = vmatprep.subr.mxu0 0.0
        %1602 = vmatpush1.msra.mxu0 0.0
        %1603 = vmatprep.subr.mxu0 0.0
        %1604 = vmatpush1.msra.mxu0 0.0
        %1605 = vmatprep.subr.mxu0 0.0
        %1606 = vmatpush1.msra.mxu0 0.0
        %1607 = vmatprep.subr.mxu0 0.0
        %1608 = vmatpush1.msra.mxu0 0.0
        %1609 = vmatprep.subr.mxu0 0.0
        %1610 = vmatpush1.msra.mxu0 0.0
        %1611 = vmatprep.subr.mxu0 0.0
        %1612 = vmatpush1.msra.mxu0 0.0
        %1613 = vmatprep.subr.mxu0 0.0
        %1614 = vmatpush1.msra.mxu0 0.0
        %1615 = vmatprep.subr.mxu0 0.0
        %1616 = vmatpush1.msra.mxu0 0.0
        %1617 = vmatprep.subr.mxu0 0.0
        %1618 = vmatpush1.msra.mxu0 %v1580
        %1619 = vmatprep.subr.mxu0 0.0
        %1620 = vmatpush1.msra.mxu0 %v1578
        %1621 = vmatprep.subr.mxu0 0.0
        %1622 = vmatpush2.msra.mxu0 0.0
        %1623 = vmatprep.subr.mxu0 0.0
        %1624 = vmatpush2.msra.mxu0 0.0
        %1625 = vmatprep.subr.mxu0 0.0
        %1626 = vmatpush2.msra.mxu0 0.0
        %1627 = vmatprep.subr.mxu0 0.0
        %1628 = vmatpush2.msra.mxu0 0.0
        %1629 = vmatprep.subr.mxu0 0.0
        %1630 = vmatpush2.msra.mxu0 0.0
        %1631 = vmatprep.subr.mxu0 0.0
        %1632 = vmatpush2.msra.mxu0 0.0
        %1633 = vmatprep.subr.mxu0 0.0
        %1634 = vmatpush2.msra.mxu0 0.0
        %1635 = vmatprep.subr.mxu0 0.0
        %1636 = vmatpush2.msra.mxu0 0.0
        %1637 = vmatprep.subr.mxu0 0.0
        %1638 = vmatpush2.msra.mxu0 0.0
        %1639 = vmatprep.subr.mxu0 0.0
        %1640 = vmatpush2.msra.mxu0 0.0
        %1641 = vmatprep.subr.mxu0 0.0
        %1642 = vmatpush2.msra.mxu0 0.0
        %1643 = vmatprep.subr.mxu0 0.0
        %1644 = vmatpush2.msra.mxu0 0.0
        %1645 = vmatprep.subr.mxu0 0.0
        %1646 = vmatpush2.msra.mxu0 0.0
        %1647 = vmatprep.subr.mxu0 0.0
        %1648 = vmatpush2.msra.mxu0 0.0
        %1649 = vmatprep.subr.mxu0 0.0
        %1650 = vmatpush2.msra.mxu0 0.0
        %1651 = vmatprep.subr.mxu0 0.0
        %1652 = vmatpush2.msra.mxu0 0.0
        %1653 = vmatprep.mubr.f32.mxu0 0.0
        %1654 = vmatmul.mubr.f32.gmra.mxu0 %v1584
        %v1655 = vpop.f32.mrf.mxu0
        %v1656 = vadd.f32 0.0, %v1655
        %v1657 = vpop.f32.mrf.mxu0
        %1658 = vmatprep.mubr.f32.mxu0 0.0
        %1659 = vmatmul.mubr.f32.gmra.mxu0 %v1587
        %v1660 = vpop.f32.mrf.mxu0
        %v1661 = vadd.f32 0.0, %v1660
        %v1662 = vpop.f32.mrf.mxu0
        %1663 = vdwg.mxu0
        %1666 = vrot.lane.b32.xlu0 %v1656, 24
        %v1667 = vpop.permute.xlu0 %1666
        %1668 = vrot.lane.b32.xlu0 %v1661, 24
        %v1669 = vpop.permute.xlu0 %1668
        %vm1672 = vcmask 261312
        %1673 = vst.msk [vmem:[#allocation3] sm:$0xff] %vm1672, %v1667
        %1674 = vst.msk [vmem:[#allocation3 + $0x8] sm:$0xff] %vm1672, %v1669
        %v1675 = vld [vmem:[#allocation3] sm:$0xff]
        %v1676 = vld [vmem:[#allocation3 + $0x8] sm:$0xff]
        %v1677 = vld [vmem:[%s586] sm:$0xff]
        %v1678 = vld [vmem:[%s586 + $0x8] sm:$0xff]
        %v1679 = vld [vmem:[%s586 + $0x10] sm:$0xff]
        %v1680 = vld [vmem:[%s586 + $0x18] sm:$0xff]
        %v1682 = vsel %vm697, %v1675, 0
        %v1685 = vsel %vm697, %v1676, 0
        %1687 = vmatprep.subr.mxu0 0.0
        %1688 = vmatpush1.msra.mxu0 0.0
        %1689 = vmatprep.subr.mxu0 0.0
        %1690 = vmatpush1.msra.mxu0 0.0
        %1691 = vmatprep.subr.mxu0 0.0
        %1692 = vmatpush1.msra.mxu0 0.0
        %1693 = vmatprep.subr.mxu0 0.0
        %1694 = vmatpush1.msra.mxu0 0.0
        %1695 = vmatprep.subr.mxu0 0.0
        %1696 = vmatpush1.msra.mxu0 0.0
        %1697 = vmatprep.subr.mxu0 0.0
        %1698 = vmatpush1.msra.mxu0 0.0
        %1699 = vmatprep.subr.mxu0 0.0
        %1700 = vmatpush1.msra.mxu0 0.0
        %1701 = vmatprep.subr.mxu0 0.0
        %1702 = vmatpush1.msra.mxu0 0.0
        %1703 = vmatprep.subr.mxu0 0.0
        %1704 = vmatpush1.msra.mxu0 0.0
        %1705 = vmatprep.subr.mxu0 0.0
        %1706 = vmatpush1.msra.mxu0 0.0
        %1707 = vmatprep.subr.mxu0 0.0
        %1708 = vmatpush1.msra.mxu0 0.0
        %1709 = vmatprep.subr.mxu0 0.0
        %1710 = vmatpush1.msra.mxu0 0.0
        %1711 = vmatprep.subr.mxu0 0.0
        %1712 = vmatpush1.msra.mxu0 %v1680
        %1713 = vmatprep.subr.mxu0 0.0
        %1714 = vmatpush1.msra.mxu0 %v1679
        %1715 = vmatprep.subr.mxu0 0.0
        %1716 = vmatpush1.msra.mxu0 %v1678
        %1717 = vmatprep.subr.mxu0 0.0
        %1718 = vmatpush1.msra.mxu0 %v1677
        %1719 = vmatprep.subr.mxu0 0.0
        %1720 = vmatpush2.msra.mxu0 0.0
        %1721 = vmatprep.subr.mxu0 0.0
        %1722 = vmatpush2.msra.mxu0 0.0
        %1723 = vmatprep.subr.mxu0 0.0
        %1724 = vmatpush2.msra.mxu0 0.0
        %1725 = vmatprep.subr.mxu0 0.0
        %1726 = vmatpush2.msra.mxu0 0.0
        %1727 = vmatprep.subr.mxu0 0.0
        %1728 = vmatpush2.msra.mxu0 0.0
        %1729 = vmatprep.subr.mxu0 0.0
        %1730 = vmatpush2.msra.mxu0 0.0
        %1731 = vmatprep.subr.mxu0 0.0
        %1732 = vmatpush2.msra.mxu0 0.0
        %1733 = vmatprep.subr.mxu0 0.0
        %1734 = vmatpush2.msra.mxu0 0.0
        %1735 = vmatprep.subr.mxu0 0.0
        %1736 = vmatpush2.msra.mxu0 0.0
        %1737 = vmatprep.subr.mxu0 0.0
        %1738 = vmatpush2.msra.mxu0 0.0
        %1739 = vmatprep.subr.mxu0 0.0
        %1740 = vmatpush2.msra.mxu0 0.0
        %1741 = vmatprep.subr.mxu0 0.0
        %1742 = vmatpush2.msra.mxu0 0.0
        %1743 = vmatprep.subr.mxu0 0.0
        %1744 = vmatpush2.msra.mxu0 0.0
        %1745 = vmatprep.subr.mxu0 0.0
        %1746 = vmatpush2.msra.mxu0 0.0
        %1747 = vmatprep.subr.mxu0 0.0
        %1748 = vmatpush2.msra.mxu0 0.0
        %1749 = vmatprep.subr.mxu0 0.0
        %1750 = vmatpush2.msra.mxu0 0.0
        %1751 = vmatprep.mubr.f32.mxu0 0.0
        %1752 = vmatmul.mubr.f32.gmra.mxu0 %v1682
        %v1753 = vpop.f32.mrf.mxu0
        %v1754 = vadd.f32 0.0, %v1753
        %v1755 = vpop.f32.mrf.mxu0
        %1756 = vmatprep.mubr.f32.mxu0 0.0
        %1757 = vmatmul.mubr.f32.gmra.mxu0 %v1685
        %v1758 = vpop.f32.mrf.mxu0
        %v1759 = vadd.f32 0.0, %v1758
        %v1760 = vpop.f32.mrf.mxu0
        %1761 = vdwg.mxu0
        %v1762 = vadd.f32 %v694, %v1754
        %v1763 = vadd.f32 %v695, %v1759
        %v1764 = vlaneseq
        %v1765 = vshrl.u32 %v1764, 7
        %v1766 = vsub.s32 2, %v1765
        %v1767 = vrot.slane %v696, %v1766
        %v1768 = vadd.f32 %v1762, %v1767
        %v1769 = vadd.f32 %v1763, %v1767
        %v1770 = vsel %vm697, %v1768, 0.0
        %1771 = vadd.xlane.f32.xlu0 %v1770
        %v1772 = vpop.xlane.xlu0 %1771
        %v1773 = vsel %vm697, %v1769, 0.0
        %1774 = vadd.xlane.f32.xlu0 %v1773
        %v1775 = vpop.xlane.xlu0 %1774
        %v1776 = vmul.f32 %v1772, %v704
        %v1777 = vmul.f32 %v1775, %v704
        %v1778 = vsub.f32 %v1768, %v1776
        %v1779 = vsub.f32 %v1769, %v1777
        %v1780 = vmul.f32 %v1778, %v1778
        %v1781 = vmul.f32 %v1779, %v1779
        %v1782 = vsel %vm697, %v1780, 0.0
        %1783 = vadd.xlane.f32.xlu0 %v1782
        %v1784 = vpop.xlane.xlu0 %1783
        %v1785 = vsel %vm697, %v1781, 0.0
        %1786 = vadd.xlane.f32.xlu0 %v1785
        %v1787 = vpop.xlane.xlu0 %1786
        %v1788 = vmul.f32 %v1784, %v704
        %v1789 = vmul.f32 %v1787, %v704
        %v1790 = vadd.f32 %v1788, 1e-06
        %v1791 = vadd.f32 %v1789, 1e-06
        %v1792 = vrsqrt.pop %v1790
        %v1793 = vrsqrt.pop %v1791
        %v1794 = vmul.f32 %v1778, %v1792
        %v1795 = vmul.f32 %v1779, %v1793
        %v1796 = vlaneseq
        %v1797 = vshrl.u32 %v1796, 7
        %v1798 = vsub.s32 3, %v1797
        %v1799 = vrot.slane %v696, %v1798
        %v1800 = vmul.f32 %v1794, %v1799
        %v1801 = vmul.f32 %v1795, %v1799
        %v1802 = vlaneseq
        %v1803 = vshrl.u32 %v1802, 7
        %v1804 = vsub.s32 4, %v1803
        %v1805 = vrot.slane %v696, %v1804
        %v1806 = vadd.f32 %v1800, %v1805
        %v1807 = vadd.f32 %v1801, %v1805
        %v1808 = vld [vmem:[%s591] sm:$0xff]
        %v1809 = vld [vmem:[%s591 + $0x8] sm:$0xff]
        %v1810 = vld [vmem:[%s591 + $0x10] sm:$0xff]
        %v1811 = vld [vmem:[%s591 + $0x18] sm:$0xff]
        %v1812 = vld [vmem:[%s576] sm:$0x1]
        %v1814 = vlaneseq
        %v1815 = vshrl.u32 %v1814, 7
        %v1816 = vsub.s32 0, %v1815
        %v1817 = vrot.slane %v1812, %v1816
        %v1820 = vsel %vm697, %v1806, 0
        %v1823 = vsel %vm697, %v1807, 0
        %1825 = vmatprep.subr.mxu0 0.0
        %1826 = vmatpush1.msra.mxu0 0.0
        %1827 = vmatprep.subr.mxu0 0.0
        %1828 = vmatpush1.msra.mxu0 0.0
        %1829 = vmatprep.subr.mxu0 0.0
        %1830 = vmatpush1.msra.mxu0 0.0
        %1831 = vmatprep.subr.mxu0 0.0
        %1832 = vmatpush1.msra.mxu0 0.0
        %1833 = vmatprep.subr.mxu0 0.0
        %1834 = vmatpush1.msra.mxu0 0.0
        %1835 = vmatprep.subr.mxu0 0.0
        %1836 = vmatpush1.msra.mxu0 0.0
        %1837 = vmatprep.subr.mxu0 0.0
        %1838 = vmatpush1.msra.mxu0 0.0
        %1839 = vmatprep.subr.mxu0 0.0
        %1840 = vmatpush1.msra.mxu0 0.0
        %1841 = vmatprep.subr.mxu0 0.0
        %1842 = vmatpush1.msra.mxu0 0.0
        %1843 = vmatprep.subr.mxu0 0.0
        %1844 = vmatpush1.msra.mxu0 0.0
        %1845 = vmatprep.subr.mxu0 0.0
        %1846 = vmatpush1.msra.mxu0 0.0
        %1847 = vmatprep.subr.mxu0 0.0
        %1848 = vmatpush1.msra.mxu0 0.0
        %1849 = vmatprep.subr.mxu0 0.0
        %1850 = vmatpush1.msra.mxu0 %v1811
        %1851 = vmatprep.subr.mxu0 0.0
        %1852 = vmatpush1.msra.mxu0 %v1810
        %1853 = vmatprep.subr.mxu0 0.0
        %1854 = vmatpush1.msra.mxu0 %v1809
        %1855 = vmatprep.subr.mxu0 0.0
        %1856 = vmatpush1.msra.mxu0 %v1808
        %1857 = vmatprep.subr.mxu0 0.0
        %1858 = vmatpush2.msra.mxu0 0.0
        %1859 = vmatprep.subr.mxu0 0.0
        %1860 = vmatpush2.msra.mxu0 0.0
        %1861 = vmatprep.subr.mxu0 0.0
        %1862 = vmatpush2.msra.mxu0 0.0
        %1863 = vmatprep.subr.mxu0 0.0
        %1864 = vmatpush2.msra.mxu0 0.0
        %1865 = vmatprep.subr.mxu0 0.0
        %1866 = vmatpush2.msra.mxu0 0.0
        %1867 = vmatprep.subr.mxu0 0.0
        %1868 = vmatpush2.msra.mxu0 0.0
        %1869 = vmatprep.subr.mxu0 0.0
        %1870 = vmatpush2.msra.mxu0 0.0
        %1871 = vmatprep.subr.mxu0 0.0
        %1872 = vmatpush2.msra.mxu0 0.0
        %1873 = vmatprep.subr.mxu0 0.0
        %1874 = vmatpush2.msra.mxu0 0.0
        %1875 = vmatprep.subr.mxu0 0.0
        %1876 = vmatpush2.msra.mxu0 0.0
        %1877 = vmatprep.subr.mxu0 0.0
        %1878 = vmatpush2.msra.mxu0 0.0
        %1879 = vmatprep.subr.mxu0 0.0
        %1880 = vmatpush2.msra.mxu0 0.0
        %1881 = vmatprep.subr.mxu0 0.0
        %1882 = vmatpush2.msra.mxu0 0.0
        %1883 = vmatprep.subr.mxu0 0.0
        %1884 = vmatpush2.msra.mxu0 0.0
        %1885 = vmatprep.subr.mxu0 0.0
        %1886 = vmatpush2.msra.mxu0 0.0
        %1887 = vmatprep.subr.mxu0 0.0
        %1888 = vmatpush2.msra.mxu0 0.0
        %1889 = vmatprep.mubr.f32.mxu0 0.0
        %1890 = vmatmul.mubr.f32.gmra.mxu0 %v1820
        %v1891 = vpop.f32.mrf.mxu0
        %v1892 = vadd.f32 %v1817, %v1891
        %v1893 = vpop.f32.mrf.mxu0
        %1894 = vmatprep.mubr.f32.mxu0 0.0
        %1895 = vmatmul.mubr.f32.gmra.mxu0 %v1823
        %v1896 = vpop.f32.mrf.mxu0
        %v1897 = vadd.f32 %v1817, %v1896
        %v1898 = vpop.f32.mrf.mxu0
        %1899 = vdwg.mxu0
        %v1900 = vmul.f32 %v1892, 0.5
        %v1901 = vmul.f32 %v1897, 0.5
        %v1902 = vmul.f32 %v1892, 0.70710677
        %v1903 = vmul.f32 %v1897, 0.70710677
        %v1904 = vmax.f32 %v1902, -4.0
        %v1905 = vmax.f32 %v1903, -4.0
        %v1906 = vmin.f32 %v1904, 4.0
        %v1907 = vmin.f32 %v1905, 4.0
        %v1908 = vmul.f32 %v1906, %v1906
        %v1909 = vmul.f32 %v1907, %v1907
        %v1910 = vmul.f32 %v1908, -2.7261424e-10
        %v1911 = vmul.f32 %v1909, -2.7261424e-10
        %v1912 = vadd.f32 %v1910, 2.7706815e-08
        %v1913 = vadd.f32 %v1911, 2.7706815e-08
        %v1914 = vmul.f32 %v1912, %v1908
        %v1915 = vmul.f32 %v1913, %v1909
        %v1916 = vadd.f32 %v1914, -2.101024e-06
        %v1917 = vadd.f32 %v1915, -2.101024e-06
        %v1918 = vmul.f32 %v1916, %v1908
        %v1919 = vmul.f32 %v1917, %v1909
        %v1920 = vadd.f32 %v1918, -5.6925062e-05
        %v1921 = vadd.f32 %v1919, -5.6925062e-05
        %v1922 = vmul.f32 %v1920, %v1908
        %v1923 = vmul.f32 %v1921, %v1909
        %v1924 = vadd.f32 %v1922, -0.00073499064
        %v1925 = vadd.f32 %v1923, -0.00073499064
        %v1926 = vmul.f32 %v1924, %v1908
        %v1927 = vmul.f32 %v1925, %v1909
        %v1928 = vadd.f32 %v1926, -0.0029546
        %v1929 = vadd.f32 %v1927, -0.0029546
        %v1930 = vmul.f32 %v1928, %v1908
        %v1931 = vmul.f32 %v1929, %v1909
        %v1932 = vadd.f32 %v1930, -0.016096033
        %v1933 = vadd.f32 %v1931, -0.016096033
        %v1934 = vmul.f32 %v1908, -1.45660715e-05
        %v1935 = vmul.f32 %v1909, -1.45660715e-05
        %v1936 = vadd.f32 %v1934, -0.00021337405
        %v1937 = vadd.f32 %v1935, -0.00021337405
        %v1938 = vmul.f32 %v1936, %v1908
        %v1939 = vmul.f32 %v1937, %v1909
        %v1940 = vadd.f32 %v1938, -0.001682827
        %v1941 = vadd.f32 %v1939, -0.001682827
        %v1942 = vmul.f32 %v1940, %v1908
        %v1943 = vmul.f32 %v1941, %v1909
        %v1944 = vadd.f32 %v1942, -0.0073733293
        %v1945 = vadd.f32 %v1943, -0.0073733293
        %v1946 = vmul.f32 %v1944, %v1908
        %v1947 = vmul.f32 %v1945, %v1909
        %v1948 = vadd.f32 %v1946, -0.014264739
        %v1949 = vadd.f32 %v1947, -0.014264739
        %v1950 = vmul.f32 %v1906, %v1932
        %v1951 = vmul.f32 %v1907, %v1933
        %v1952 = vrcp.pop %v1948
        %v1953 = vrcp.pop %v1949
        %v1954 = vmul.f32 %v1950, %v1952
        %v1955 = vmul.f32 %v1951, %v1953
        %v1956 = vadd.f32 %v1954, 1.0
        %v1957 = vadd.f32 %v1955, 1.0
        %v1958 = vmul.f32 %v1900, %v1956
        %v1959 = vmul.f32 %v1901, %v1957
        %v1960 = vld [vmem:[%s596] sm:$0xff]
        %v1961 = vld [vmem:[%s596 + $0x8] sm:$0xff]
        %v1962 = vld [vmem:[%s596 + $0x10] sm:$0xff]
        %v1963 = vld [vmem:[%s596 + $0x18] sm:$0xff]
        %v1964 = vld [vmem:[%s596 + $0x20] sm:$0xff]
        %v1965 = vld [vmem:[%s596 + $0x28] sm:$0xff]
        %v1966 = vld [vmem:[%s596 + $0x30] sm:$0xff]
        %v1967 = vld [vmem:[%s596 + $0x38] sm:$0xff]
        %vm1968 = vcmask 523264
        %v1970 = vsel %vm1968, %v1958, 0
        %v1973 = vsel %vm1968, %v1959, 0
        %1975 = vmatprep.subr.mxu0 0.0
        %1976 = vmatpush1.msra.mxu0 0.0
        %1977 = vmatprep.subr.mxu0 0.0
        %1978 = vmatpush1.msra.mxu0 0.0
        %1979 = vmatprep.subr.mxu0 0.0
        %1980 = vmatpush1.msra.mxu0 0.0
        %1981 = vmatprep.subr.mxu0 0.0
        %1982 = vmatpush1.msra.mxu0 0.0
        %1983 = vmatprep.subr.mxu0 0.0
        %1984 = vmatpush1.msra.mxu0 0.0
        %1985 = vmatprep.subr.mxu0 0.0
        %1986 = vmatpush1.msra.mxu0 0.0
        %1987 = vmatprep.subr.mxu0 0.0
        %1988 = vmatpush1.msra.mxu0 0.0
        %1989 = vmatprep.subr.mxu0 0.0
        %1990 = vmatpush1.msra.mxu0 0.0
        %1991 = vmatprep.subr.mxu0 0.0
        %1992 = vmatpush1.msra.mxu0 %v1967
        %1993 = vmatprep.subr.mxu0 0.0
        %1994 = vmatpush1.msra.mxu0 %v1966
        %1995 = vmatprep.subr.mxu0 0.0
        %1996 = vmatpush1.msra.mxu0 %v1965
        %1997 = vmatprep.subr.mxu0 0.0
        %1998 = vmatpush1.msra.mxu0 %v1964
        %1999 = vmatprep.subr.mxu0 0.0
        %2000 = vmatpush1.msra.mxu0 %v1963
        %2001 = vmatprep.subr.mxu0 0.0
        %2002 = vmatpush1.msra.mxu0 %v1962
        %2003 = vmatprep.subr.mxu0 0.0
        %2004 = vmatpush1.msra.mxu0 %v1961
        %2005 = vmatprep.subr.mxu0 0.0
        %2006 = vmatpush1.msra.mxu0 %v1960
        %2007 = vmatprep.subr.mxu0 0.0
        %2008 = vmatpush2.msra.mxu0 0.0
        %2009 = vmatprep.subr.mxu0 0.0
        %2010 = vmatpush2.msra.mxu0 0.0
        %2011 = vmatprep.subr.mxu0 0.0
        %2012 = vmatpush2.msra.mxu0 0.0
        %2013 = vmatprep.subr.mxu0 0.0
        %2014 = vmatpush2.msra.mxu0 0.0
        %2015 = vmatprep.subr.mxu0 0.0
        %2016 = vmatpush2.msra.mxu0 0.0
        %2017 = vmatprep.subr.mxu0 0.0
        %2018 = vmatpush2.msra.mxu0 0.0
        %2019 = vmatprep.subr.mxu0 0.0
        %2020 = vmatpush2.msra.mxu0 0.0
        %2021 = vmatprep.subr.mxu0 0.0
        %2022 = vmatpush2.msra.mxu0 0.0
        %2023 = vmatprep.subr.mxu0 0.0
        %2024 = vmatpush2.msra.mxu0 0.0
        %2025 = vmatprep.subr.mxu0 0.0
        %2026 = vmatpush2.msra.mxu0 0.0
        %2027 = vmatprep.subr.mxu0 0.0
        %2028 = vmatpush2.msra.mxu0 0.0
        %2029 = vmatprep.subr.mxu0 0.0
        %2030 = vmatpush2.msra.mxu0 0.0
        %2031 = vmatprep.subr.mxu0 0.0
        %2032 = vmatpush2.msra.mxu0 0.0
        %2033 = vmatprep.subr.mxu0 0.0
        %2034 = vmatpush2.msra.mxu0 0.0
        %2035 = vmatprep.subr.mxu0 0.0
        %2036 = vmatpush2.msra.mxu0 0.0
        %2037 = vmatprep.subr.mxu0 0.0
        %2038 = vmatpush2.msra.mxu0 0.0
        %2039 = vmatprep.mubr.f32.mxu0 0.0
        %2040 = vmatmul.mubr.f32.gmra.mxu0 %v1970
        %v2041 = vpop.f32.mrf.mxu0
        %v2042 = vadd.f32 0.0, %v2041
        %v2043 = vpop.f32.mrf.mxu0
        %2044 = vmatprep.mubr.f32.mxu0 0.0
        %2045 = vmatmul.mubr.f32.gmra.mxu0 %v1973
        %v2046 = vpop.f32.mrf.mxu0
        %v2047 = vadd.f32 0.0, %v2046
        %v2048 = vpop.f32.mrf.mxu0
        %2049 = vdwg.mxu0
        %v2050 = vadd.f32 %v1768, %v2042
        %v2051 = vadd.f32 %v1769, %v2047
        %v2052 = vlaneseq
        %v2053 = vshrl.u32 %v2052, 7
        %v2054 = vsub.s32 5, %v2053
        %v2055 = vrot.slane %v696, %v2054
        %v2056 = vadd.f32 %v2050, %v2055
        %v2057 = vadd.f32 %v2051, %v2055
        %2058 = vst.msk [vmem:[#allocation2] sm:$0xff] %vm697, %v2056
        %2059 = vst.msk [vmem:[#allocation2 + $0x8] sm:$0xff] %vm697, %v2057
        %p2060 = scmp.eq.s32.totalorder %s39, 1
        // Predicated region
        $region77: #{tpu_custom_call.1} parent=63 // pred_check
          %p2061 = pneg %p2060
        $region78: #{tpu_custom_call.1} parent=63 // pred_check_branch
          %2063 = sbr.rel (%p2061) target = $region80
        $region79: #{tpu_custom_call.1} parent=63 // pred_region
          %v2064 = vld [vmem:[%s10] sm:$0x3]
          %v2065 = vsel %vm697, %v2056, 0.0
          %2066 = vadd.xlane.f32.xlu0 %v2065
          %v2067 = vpop.xlane.xlu0 %2066
          %v2068 = vsel %vm697, %v2057, 0.0
          %2069 = vadd.xlane.f32.xlu0 %v2068
          %v2070 = vpop.xlane.xlu0 %2069
          %v2071 = vmul.f32 %v2067, %v704
          %v2072 = vmul.f32 %v2070, %v704
          %v2073 = vsub.f32 %v2056, %v2071
          %v2074 = vsub.f32 %v2057, %v2072
          %v2075 = vmul.f32 %v2073, %v2073
          %v2076 = vmul.f32 %v2074, %v2074
          %v2077 = vsel %vm697, %v2075, 0.0
          %2078 = vadd.xlane.f32.xlu0 %v2077
          %v2079 = vpop.xlane.xlu0 %2078
          %v2080 = vsel %vm697, %v2076, 0.0
          %2081 = vadd.xlane.f32.xlu0 %v2080
          %v2082 = vpop.xlane.xlu0 %2081
          %v2083 = vmul.f32 %v2079, %v704
          %v2084 = vmul.f32 %v2082, %v704
          %v2085 = vadd.f32 %v2083, 1e-06
          %v2086 = vadd.f32 %v2084, 1e-06
          %v2087 = vrsqrt.pop %v2085
          %v2088 = vrsqrt.pop %v2086
          %v2089 = vmul.f32 %v2073, %v2087
          %v2090 = vmul.f32 %v2074, %v2088
          %v2091 = vlaneseq
          %v2092 = vshrl.u32 %v2091, 7
          %v2093 = vsub.s32 0, %v2092
          %v2094 = vrot.slane %v2064, %v2093
          %v2095 = vmul.f32 %v2089, %v2094
          %v2096 = vmul.f32 %v2090, %v2094
          %v2097 = vlaneseq
          %v2098 = vshrl.u32 %v2097, 7
          %v2099 = vsub.s32 1, %v2098
          %v2100 = vrot.slane %v2064, %v2099
          %v2101 = vadd.f32 %v2095, %v2100
          %v2102 = vadd.f32 %v2096, %v2100
          %2103 = vst.msk [vmem:[%s559] sm:$0xff] %vm697, %v2101
          %2104 = vst.msk [vmem:[%s559 + $0x8] sm:$0xff] %vm697, %v2102
        $region80: #{tpu_custom_call.1} parent=63 // pred_fallthru
          _
        %s2105 = sand.u32 %s325, 1
        %s2106 = scalar_lea.sflag [#allocation6], %s2105
        %s2107 = sand.u32 %s325, 1
        %s2108 = smul.addr %s2107, 16
        %s2109 = scalar_lea.vmem [#allocation9], %s2108
        %s2110 = sand.u32 %s353, 1
        %s2111 = scalar_lea.sflag [#allocation11], %s2110
        %s2112 = sand.u32 %s353, 1
        %s2113 = smul.addr %s2112, 64
        %s2114 = scalar_lea.vmem [#allocation10], %s2113
        // Predicated region
        $region81: #{tpu_custom_call.1} parent=63 // pred_check
          %p2115 = pneg %p335
        $region82: #{tpu_custom_call.1} parent=63 // pred_check_branch
          %2117 = sbr.rel (%p2115) target = $region84
        $region83: #{tpu_custom_call.1} parent=63 // pred_region
          %s2119 = ssub.s32 256, 256
          %2120 = vsyncadd %s2106, %s2119
          %s2121 = smul.addr %s38, 2
          %s2122 = smul.addr %s2121, 128
          %s2123 = scalar_lea.hbm %s11, %s2122
          %s2124 = sshll.u32 %s2109, 4
          %s2125 = int_to_ptr.vmem [resolvable:$true] %s2124
          %2130 = dma.vmem_to_hbm [thread:$0]  %s2125, 256, %s2123, %s2106, 128, 128, 8
        $region84: #{tpu_custom_call.1} parent=63 // pred_fallthru
          _
        // Predicated region
        $region85: #{tpu_custom_call.1} parent=63 // pred_check
          %p2131 = pneg %p363
        $region86: #{tpu_custom_call.1} parent=63 // pred_check_branch
          %2133 = sbr.rel (%p2131) target = $region88
        $region87: #{tpu_custom_call.1} parent=63 // pred_region
          %s2134 = smul.u32 4, %s38
          %s2136 = ssub.s32 1024, 1024
          %2137 = vsyncadd %s2111, %s2136
          %s2138 = smul.addr %s2134, 2
          %s2139 = smul.addr %s39, 16
          %s2140 = sadd.s32 %s2138, %s2139
          %s2141 = smul.addr %s2140, 128
          %s2142 = scalar_lea.hbm %s12, %s2141
          %s2143 = sshll.u32 %s2114, 4
          %s2144 = int_to_ptr.vmem [resolvable:$true] %s2143
          %2149 = dma.vmem_to_hbm [thread:$0]  %s2144, 1024, %s2142, %s2111, 128, 128, 8
        $region88: #{tpu_custom_call.1} parent=63 // pred_fallthru
          _
      $region64: #{tpu_custom_call.1} parent=5 // pred_fallthru
        _
      %p2150 = scmp.le.s32.totalorder 2, %s29
      // Predicated region
      $region89: #{tpu_custom_call.1} parent=5 // pred_check
        %p2151 = pneg %p2150
      $region90: #{tpu_custom_call.1} parent=5 // pred_check_branch
        %2153 = sbr.rel (%p2151) target = $region92
      $region91: #{tpu_custom_call.1} parent=5 // pred_region
        %s2154 = ssub.s32 %s29, 2
        // Predicated region
        $region93: #{tpu_custom_call.1} parent=91 // pred_check
          %p2155 = pneg %p341
        $region94: #{tpu_custom_call.1} parent=91 // pred_check_branch
          %2157 = sbr.rel (%p2155) target = $region96
        $region95: #{tpu_custom_call.1} parent=91 // pred_region
          %s2158 = sand.u32 %s326, 1
          %s2159 = scalar_lea.sflag [#allocation6], %s2158
          %s2160 = sand.u32 %s326, 1
          %s2161 = smul.addr %s2160, 16
          %s2162 = scalar_lea.vmem [#allocation9], %s2161
          %2163 = dma.done %s2159, 256
        $region96: #{tpu_custom_call.1} parent=91 // pred_fallthru
          _
        // Predicated region
        $region97: #{tpu_custom_call.1} parent=91 // pred_check
          %p2164 = pneg %p369
        $region98: #{tpu_custom_call.1} parent=91 // pred_check_branch
          %2166 = sbr.rel (%p2164) target = $region100
        $region99: #{tpu_custom_call.1} parent=91 // pred_region
          %s2167 = sand.u32 %s354, 1
          %s2168 = scalar_lea.sflag [#allocation11], %s2167
          %s2169 = sand.u32 %s354, 1
          %s2170 = smul.addr %s2169, 64
          %s2171 = scalar_lea.vmem [#allocation10], %s2170
          %2172 = dma.done %s2168, 1024
        $region100: #{tpu_custom_call.1} parent=91 // pred_fallthru
          _
      $region92: #{tpu_custom_call.1} parent=5 // pred_fallthru
        _
    $region6: #{tpu_custom_call.1} parent=1 // loop_footer
      %s33 = sadd.s32 1, %s29
    $region7: #{tpu_custom_call.1} parent=1 // loop_footer_branch
      %28 = sbr.rel target = $region3
    $region8: #{tpu_custom_call.1} parent=1 // loop_exit
      _
    %2173 = vsyncpa [#allocation5], 1
    %s2174 = scalar_lea.sflag [#allocation5], 1
    %2175 = vsyncpa %s2174, 1
    %2176 = vsyncpa [#allocation8], 1
    %2177 = vsyncpa [#allocation6], 1
    %s2178 = scalar_lea.sflag [#allocation6], 1
    %2179 = vsyncpa %s2178, 1
    %2180 = vsyncpa [#allocation11], 1
    %s2181 = scalar_lea.sflag [#allocation11], 1
    %2182 = vsyncpa %s2181, 1

</llo_original>
